<compile_context>
chip_gen: v6e
topology: v6e:2x2x1
jax: 0.10.0
libtpu: 0.0.40
codegen_flags: <defaults>
</compile_context>

<pallas_src>
import functools

import jax
import jax.numpy as jnp
from jax.experimental import pallas as pl
from jax.experimental.pallas import tpu as pltpu

_EPS = 1e-6


def _bitlinear_fwd(x, g, w_int, post_scale):
    """x: (n, d) f32; g: (1, d) RMSNorm gain; w_int: (d, k) integer-valued bf16
    (already transposed to [in, out]); post_scale: scalar = clamp(mean|W|,1e-5)/127.
    Returns (n, k) f32."""
    # RMSNorm (computed in f32, like x.float() in the reference).
    ms = jnp.mean(x * x, axis=-1, keepdims=True)
    xn = x * jax.lax.rsqrt(ms + _EPS) * g

    # Per-token 8-bit activation quantization; keep the INTEGER values.
    a_max = jnp.maximum(jnp.max(jnp.abs(xn), axis=-1, keepdims=True), 1e-5)
    x_int = jnp.clip(jnp.round(xn * (127.0 / a_max)), -128.0, 127.0)

    # Integer-exact bf16 matmul with f32 accumulation (MXU).  |x_int| <= 127 and
    # w_int in {-1,0,1} are exactly representable in bf16, so the dot is exact.
    acc = jnp.dot(x_int.astype(jnp.bfloat16), w_int,
                  preferred_element_type=jnp.float32)

    # Deferred (1/a_scale) * (1/w_scale) scaling: one per-row multiply.
    return acc * (a_max * post_scale)


def feedforward_kernel(x_ref, g1_ref, w1_ref, g2_ref, w2_ref, s_ref, o_ref):
    x = x_ref[...].astype(jnp.float32)                          # (blk_n, d)
    h = _bitlinear_fwd(x, g1_ref[...], w1_ref[...], s_ref[0])   # (blk_n, 4d)
    h = jnp.maximum(h, 0.0)                                     # ReLU
    y = _bitlinear_fwd(h, g2_ref[...], w2_ref[...], s_ref[1])   # (blk_n, d)
    # TODO(synk): training-mode dropout mask not implemented (eval-mode identity).
    o_ref[...] = y.astype(o_ref.dtype)


def _weight_quant_int(w):
    """Per-tensor 1.58-bit quantization, done ONCE outside the grid loop.
    Returns (integer-valued {-1,0,1} matrix f32, 1/w_scale scalar f32)."""
    w = w.astype(jnp.float32)
    m = jnp.maximum(jnp.mean(jnp.abs(w)), 1e-5)      # = 1 / w_scale
    w_int = jnp.clip(jnp.round(w * (1.0 / m)), -1.0, 1.0)
    return w_int, m


@functools.partial(jax.jit, static_argnames=("blk_n",))
def feedforward(x, g1, w1, g2, w2, *, blk_n=128):
    """x: (N, D).  g1: (D,), w1: (4D, D), g2: (4D,), w2: (D, 4D)."""
    n, d = x.shape
    hdim = w1.shape[0]
    assert w1.shape == (hdim, d) and w2.shape == (d, hdim)
    assert d % 128 == 0 and hdim % 128 == 0, "feature dims must be lane-aligned"

    # Token tiling: multiple of 8 sublanes; pad ragged token counts.
    blk_n = max(8, min(blk_n, ((n + 7) // 8) * 8))
    n_pad = pl.cdiv(n, blk_n) * blk_n
    x_in = jnp.pad(x, ((0, n_pad - n), (0, 0))) if n_pad != n else x

    g1 = jnp.asarray(g1, jnp.float32).reshape(1, d)
    g2 = jnp.asarray(g2, jnp.float32).reshape(1, hdim)

    # Hoisted per-tensor weight quantization + pre-transpose to [in, out].
    w1_int, m1 = _weight_quant_int(w1)
    w2_int, m2 = _weight_quant_int(w2)
    w1t = w1_int.T.astype(jnp.bfloat16)               # (d, hdim), exact integers
    w2t = w2_int.T.astype(jnp.bfloat16)               # (hdim, d), exact integers
    # Combined post-matmul scale per layer: (1/w_scale) / 127.
    post_scales = (jnp.stack([m1, m2]) * (1.0 / 127.0)).astype(jnp.float32)

    grid = (n_pad // blk_n,)

    # VMEM budget: resident bf16 weights (double-buffered) + activation tiles.
    # TODO(synk): for large D (v7x has 64 MiB VMEM) tile the hidden dimension
    # instead of keeping W1/W2 fully resident.
    est = (2 * (w1t.size + w2t.size) * 2          # weights, 2x buffering, bf16
           + 6 * blk_n * (d + hdim) * 4           # activation tiles / temps, f32
           + (8 << 20))                           # headroom
    vmem_limit = int(min(max(est, 32 << 20), 96 << 20))

    out = pl.pallas_call(
        feedforward_kernel,
        out_shape=jax.ShapeDtypeStruct((n_pad, d), x.dtype),
        grid_spec=pltpu.PrefetchScalarGridSpec(
            num_scalar_prefetch=0,
            grid=grid,
            in_specs=[
                pl.BlockSpec((blk_n, d), lambda i: (i, 0)),      # x token tile
                pl.BlockSpec((1, d), lambda i: (0, 0)),          # RMSNorm1 gain
                pl.BlockSpec((d, hdim), lambda i: (0, 0)),       # W1 int-bf16 [in,out]
                pl.BlockSpec((1, hdim), lambda i: (0, 0)),       # RMSNorm2 gain
                pl.BlockSpec((hdim, d), lambda i: (0, 0)),       # W2 int-bf16 [in,out]
                pl.BlockSpec(memory_space=pltpu.MemorySpace.SMEM),  # post-scale scalars
            ],
            out_specs=pl.BlockSpec((blk_n, d), lambda i: (i, 0)),
        ),
        compiler_params=pltpu.CompilerParams(
            dimension_semantics=("parallel",),
            vmem_limit_bytes=vmem_limit,
        ),
    )(x_in, g1, w1t, g2, w2t, post_scales)

    return out[:n] if n_pad != n else out


# ----------------------------------------------------------------------------
# Pure-JAX reference (faithful to the PyTorch training-mode forward values).
# ----------------------------------------------------------------------------
def _bitlinear_ref(x, g, w, eps=1e-6):
    ms = jnp.mean(x * x, axis=-1, keepdims=True)
    xn = x * jax.lax.rsqrt(ms + eps) * g
    a_scale = 127.0 / jnp.maximum(jnp.max(jnp.abs(xn), axis=-1, keepdims=True), 1e-5)
    x_q = jnp.clip(jnp.round(xn * a_scale), -128.0, 127.0) / a_scale
    w_scale = 1.0 / jnp.maximum(jnp.mean(jnp.abs(w)), 1e-5)
    w_q = jnp.clip(jnp.round(w * w_scale), -1.0, 1.0) / w_scale
    return jnp.dot(x_q, w_q.T, preferred_element_type=jnp.float32)


def feedforward_ref(x, g1, w1, g2, w2):
    h = _bitlinear_ref(x.astype(jnp.float32), g1.reshape(1, -1), w1)
    h = jnp.maximum(h, 0.0)
    return _bitlinear_ref(h, g2.reshape(1, -1), w2).astype(x.dtype)


if __name__ == "__main__":
    n_embd = 128
    hidden = 4 * n_embd            # 512
    batch, seq = 2, 128
    N = batch * seq                # 256 tokens -> 2 grid steps at blk_n=128

    key = jax.random.PRNGKey(0)
    kx, kw1, kw2 = jax.random.split(key, 3)

    # Input tokens: (batch, seq, n_embd) flattened to (N, n_embd)
    x = jax.random.normal(kx, (batch, seq, n_embd), dtype=jnp.float32).reshape(N, n_embd)

    # Parameters matching the module shapes (nn.Linear: [out_features, in_features])
    bound1 = 1.0 / (n_embd ** 0.5)
    bound2 = 1.0 / (hidden ** 0.5)
    w1 = jax.random.uniform(kw1, (hidden, n_embd), jnp.float32, -bound1, bound1)
    w2 = jax.random.uniform(kw2, (n_embd, hidden), jnp.float32, -bound2, bound2)
    g1 = jnp.ones((n_embd,), jnp.float32)
    g2 = jnp.ones((hidden,), jnp.float32)

    out = feedforward(x, g1, w1, g2, w2)
    out = jax.block_until_ready(out)
    ref = feedforward_ref(x, g1, w1, g2, w2)
    assert out.shape == (N, n_embd)

    # The kernel defers the (1/a_scale)*(1/w_scale) divides until after an exact
    # integer matmul.  Versus the straight f32 reference this only reorders fp
    # rounding, but a hidden activation that sits exactly on a round() boundary
    # can land in the adjacent quantization bucket, perturbing isolated output
    # elements by ~one quantization step.  So: require tight bulk agreement and
    # bound the worst-case deviation well below any real-bug signature.
    err = jnp.abs(out - ref)
    mean_err = float(jnp.mean(err))
    max_err = float(jnp.max(err))
    rel_fro = float(jnp.linalg.norm(out - ref) / jnp.linalg.norm(ref))
    assert mean_err < 1e-3, f"mean abs err too large: {mean_err}"
    assert rel_fro < 2e-2, f"relative Frobenius err too large: {rel_fro}"
    assert max_err < 1e-1, f"max abs err too large: {max_err}"

    print("KERNEL_OK")
</pallas_src>

<mosaic_0001>
module attributes {stable_mosaic.version = 11 : i64} {
  func.func @feedforward_kernel(%arg0: i32, %arg1: memref<128x128xf32, #tpu.memory_space<vmem>>, %arg2: memref<1x128xf32, #tpu.memory_space<vmem>>, %arg3: memref<128x512xbf16, #tpu.memory_space<vmem>>, %arg4: memref<1x512xf32, #tpu.memory_space<vmem>>, %arg5: memref<512x128xbf16, #tpu.memory_space<vmem>>, %arg6: memref<2xf32, #tpu.memory_space<smem>>, %arg7: memref<128x128xf32, #tpu.memory_space<vmem>>) attributes {dimension_semantics = [#tpu.dimension_semantics<parallel>], iteration_bounds = array<i64: 2>, scalar_prefetch = 0 : i64, scratch_operands = 0 : i64, tpu.core_type = #tpu.core_type<tc>, window_params = [{transform_indices = @transform_0, window_bounds = array<i64: 128, 128>}, {pipeline_mode = #tpu.pipeline_mode<synchronous>, transform_indices = @transform_1, window_bounds = array<i64: 1, 128>}, {pipeline_mode = #tpu.pipeline_mode<synchronous>, transform_indices = @transform_2, window_bounds = array<i64: 128, 512>}, {pipeline_mode = #tpu.pipeline_mode<synchronous>, transform_indices = @transform_3, window_bounds = array<i64: 1, 512>}, {pipeline_mode = #tpu.pipeline_mode<synchronous>, transform_indices = @transform_4, window_bounds = array<i64: 512, 128>}, {transform_indices = @transform_5, window_bounds = array<i64: 2>}, {transform_indices = @transform_6, window_bounds = array<i64: 128, 128>}]} {
    %c0 = arith.constant 0 : index
    %c0_0 = arith.constant 0 : index
    %0 = vector.load %arg1[%c0, %c0_0] : memref<128x128xf32, #tpu.memory_space<vmem>>, vector<128x128xf32>
    %c0_1 = arith.constant 0 : index
    %c0_2 = arith.constant 0 : index
    %1 = vector.load %arg2[%c0_1, %c0_2] : memref<1x128xf32, #tpu.memory_space<vmem>>, vector<1x128xf32>
    %c0_3 = arith.constant 0 : index
    %c0_4 = arith.constant 0 : index
    %2 = vector.load %arg3[%c0_3, %c0_4] : memref<128x512xbf16, #tpu.memory_space<vmem>>, vector<128x512xbf16>
    %c0_5 = arith.constant 0 : index
    %3 = memref.load %arg6[%c0_5] : memref<2xf32, #tpu.memory_space<smem>>
    %4 = arith.mulf %0, %0 : vector<128x128xf32>
    %cst = arith.constant dense<0.000000e+00> : vector<128xf32>
    %5 = vector.multi_reduction <add>, %4, %cst [1] : vector<128x128xf32> to vector<128xf32>
    %6 = vector.shape_cast %5 : vector<128xf32> to vector<128x1xf32>
    %cst_6 = arith.constant 1.280000e+02 : f32
    %7 = vector.broadcast %cst_6 : f32 to vector<128x1xf32>
    %8 = arith.divf %6, %7 : vector<128x1xf32>
    %cst_7 = arith.constant 9.99999997E-7 : f32
    %9 = vector.broadcast %cst_7 : f32 to vector<128x1xf32>
    %10 = arith.addf %8, %9 : vector<128x1xf32>
    %11 = math.rsqrt %10 : vector<128x1xf32>
    %12 = vector.broadcast %11 : vector<128x1xf32> to vector<128x128xf32>
    %13 = arith.mulf %0, %12 : vector<128x128xf32>
    %14 = vector.broadcast %1 : vector<1x128xf32> to vector<128x128xf32>
    %15 = arith.mulf %13, %14 : vector<128x128xf32>
    %16 = math.absf %15 : vector<128x128xf32>
    %cst_8 = arith.constant dense<0xFF800000> : vector<128xf32>
    %17 = vector.multi_reduction <maximumf>, %16, %cst_8 [1] : vector<128x128xf32> to vector<128xf32>
    %18 = vector.shape_cast %17 : vector<128xf32> to vector<128x1xf32>
    %cst_9 = arith.constant 9.99999974E-6 : f32
    %19 = vector.broadcast %cst_9 : f32 to vector<128x1xf32>
    %20 = arith.maximumf %18, %19 : vector<128x1xf32>
    %cst_10 = arith.constant 1.270000e+02 : f32
    %21 = vector.broadcast %cst_10 : f32 to vector<128x1xf32>
    %22 = arith.divf %21, %20 : vector<128x1xf32>
    %23 = vector.broadcast %22 : vector<128x1xf32> to vector<128x128xf32>
    %24 = arith.mulf %15, %23 : vector<128x128xf32>
    %25 = math.roundeven %24 : vector<128x128xf32>
    %cst_11 = arith.constant -1.280000e+02 : f32
    %cst_12 = arith.constant 1.270000e+02 : f32
    %26 = vector.broadcast %cst_11 : f32 to vector<128x128xf32>
    %27 = arith.maximumf %26, %25 : vector<128x128xf32>
    %28 = vector.broadcast %cst_12 : f32 to vector<128x128xf32>
    %29 = arith.minimumf %28, %27 : vector<128x128xf32>
    %30 = arith.truncf %29 : vector<128x128xf32> to vector<128x128xbf16>
    %cst_13 = arith.constant dense<0.000000e+00> : vector<128x512xf32>
    %31 = tpu.matmul %30, %2, %cst_13 {dimension_numbers = #tpu.dot_dimension_numbers<[1], [0], [0], [1], [0, 0, 1, 1], [], []>} : vector<128x128xbf16>, vector<128x512xbf16>, vector<128x512xf32> -> vector<128x512xf32>
    %32 = vector.broadcast %3 : f32 to vector<128x1xf32>
    %33 = arith.mulf %20, %32 : vector<128x1xf32>
    %34 = vector.broadcast %33 : vector<128x1xf32> to vector<128x512xf32>
    %35 = arith.mulf %31, %34 : vector<128x512xf32>
    %cst_14 = arith.constant 0.000000e+00 : f32
    %36 = vector.broadcast %cst_14 : f32 to vector<128x512xf32>
    %37 = arith.maximumf %35, %36 : vector<128x512xf32>
    %c0_15 = arith.constant 0 : index
    %c0_16 = arith.constant 0 : index
    %38 = vector.load %arg4[%c0_15, %c0_16] : memref<1x512xf32, #tpu.memory_space<vmem>>, vector<1x512xf32>
    %c0_17 = arith.constant 0 : index
    %c0_18 = arith.constant 0 : index
    %39 = vector.load %arg5[%c0_17, %c0_18] : memref<512x128xbf16, #tpu.memory_space<vmem>>, vector<512x128xbf16>
    %c1 = arith.constant 1 : index
    %40 = memref.load %arg6[%c1] : memref<2xf32, #tpu.memory_space<smem>>
    %41 = arith.mulf %37, %37 : vector<128x512xf32>
    %cst_19 = arith.constant dense<0.000000e+00> : vector<128xf32>
    %42 = vector.multi_reduction <add>, %41, %cst_19 [1] : vector<128x512xf32> to vector<128xf32>
    %43 = vector.shape_cast %42 : vector<128xf32> to vector<128x1xf32>
    %cst_20 = arith.constant 5.120000e+02 : f32
    %44 = vector.broadcast %cst_20 : f32 to vector<128x1xf32>
    %45 = arith.divf %43, %44 : vector<128x1xf32>
    %cst_21 = arith.constant 9.99999997E-7 : f32
    %46 = vector.broadcast %cst_21 : f32 to vector<128x1xf32>
    %47 = arith.addf %45, %46 : vector<128x1xf32>
    %48 = math.rsqrt %47 : vector<128x1xf32>
    %49 = vector.broadcast %48 : vector<128x1xf32> to vector<128x512xf32>
    %50 = arith.mulf %37, %49 : vector<128x512xf32>
    %51 = vector.broadcast %38 : vector<1x512xf32> to vector<128x512xf32>
    %52 = arith.mulf %50, %51 : vector<128x512xf32>
    %53 = math.absf %52 : vector<128x512xf32>
    %cst_22 = arith.constant dense<0xFF800000> : vector<128xf32>
    %54 = vector.multi_reduction <maximumf>, %53, %cst_22 [1] : vector<128x512xf32> to vector<128xf32>
    %55 = vector.shape_cast %54 : vector<128xf32> to vector<128x1xf32>
    %cst_23 = arith.constant 9.99999974E-6 : f32
    %56 = vector.broadcast %cst_23 : f32 to vector<128x1xf32>
    %57 = arith.maximumf %55, %56 : vector<128x1xf32>
    %cst_24 = arith.constant 1.270000e+02 : f32
    %58 = vector.broadcast %cst_24 : f32 to vector<128x1xf32>
    %59 = arith.divf %58, %57 : vector<128x1xf32>
    %60 = vector.broadcast %59 : vector<128x1xf32> to vector<128x512xf32>
    %61 = arith.mulf %52, %60 : vector<128x512xf32>
    %62 = math.roundeven %61 : vector<128x512xf32>
    %cst_25 = arith.constant -1.280000e+02 : f32
    %cst_26 = arith.constant 1.270000e+02 : f32
    %63 = vector.broadcast %cst_25 : f32 to vector<128x512xf32>
    %64 = arith.maximumf %63, %62 : vector<128x512xf32>
    %65 = vector.broadcast %cst_26 : f32 to vector<128x512xf32>
    %66 = arith.minimumf %65, %64 : vector<128x512xf32>
    %67 = arith.truncf %66 : vector<128x512xf32> to vector<128x512xbf16>
    %cst_27 = arith.constant dense<0.000000e+00> : vector<128x128xf32>
    %68 = tpu.matmul %67, %39, %cst_27 {dimension_numbers = #tpu.dot_dimension_numbers<[1], [0], [0], [1], [0, 0, 1, 1], [], []>} : vector<128x512xbf16>, vector<512x128xbf16>, vector<128x128xf32> -> vector<128x128xf32>
    %69 = vector.broadcast %40 : f32 to vector<128x1xf32>
    %70 = arith.mulf %57, %69 : vector<128x1xf32>
    %71 = vector.broadcast %70 : vector<128x1xf32> to vector<128x128xf32>
    %72 = arith.mulf %68, %71 : vector<128x128xf32>
    %c0_28 = arith.constant 0 : index
    %c0_29 = arith.constant 0 : index
    %73 = vector.load %arg7[%c0_28, %c0_29] : memref<128x128xf32, #tpu.memory_space<vmem>>, vector<128x128xf32>
    tpu.vector_store %arg7[%c0_28, %c0_29], %72 {strides = array<i32>} : memref<128x128xf32, #tpu.memory_space<vmem>>, vector<128x128xf32>,
    return
  }
  func.func @transform_0(%arg0: i32) -> (i32, i32) {
    %c0_i32 = arith.constant 0 : i32
    %c0_i32_0 = arith.constant 0 : i32
    return %arg0, %c0_i32 : i32, i32
  }
  func.func @transform_1(%arg0: i32) -> (i32, i32) {
    %c0_i32 = arith.constant 0 : i32
    %c0_i32_0 = arith.constant 0 : i32
    %c0_i32_1 = arith.constant 0 : i32
    return %c0_i32, %c0_i32_0 : i32, i32
  }
  func.func @transform_2(%arg0: i32) -> (i32, i32) {
    %c0_i32 = arith.constant 0 : i32
    %c0_i32_0 = arith.constant 0 : i32
    %c0_i32_1 = arith.constant 0 : i32
    return %c0_i32, %c0_i32_0 : i32, i32
  }
  func.func @transform_3(%arg0: i32) -> (i32, i32) {
    %c0_i32 = arith.constant 0 : i32
    %c0_i32_0 = arith.constant 0 : i32
    %c0_i32_1 = arith.constant 0 : i32
    return %c0_i32, %c0_i32_0 : i32, i32
  }
  func.func @transform_4(%arg0: i32) -> (i32, i32) {
    %c0_i32 = arith.constant 0 : i32
    %c0_i32_0 = arith.constant 0 : i32
    %c0_i32_1 = arith.constant 0 : i32
    return %c0_i32, %c0_i32_0 : i32, i32
  }
  func.func @transform_5(%arg0: i32) -> i32 {
    %c0_i32 = arith.constant 0 : i32
    %c0_i32_0 = arith.constant 0 : i32
    return %c0_i32 : i32
  }
  func.func @transform_6(%arg0: i32) -> (i32, i32) {
    %c0_i32 = arith.constant 0 : i32
    %c0_i32_0 = arith.constant 0 : i32
    return %arg0, %c0_i32 : i32, i32
  }
}

</mosaic_0001>

<llo_original>
// kernel: feedforward.1
$region0: #{feedforward.1}
  #allocation0 [shape = 'u32[]', space=smem, size = 0x4, offset = 0x4, fixed_abs, tag = 'smem constant byte address 0x4 - core index']
  #allocation1 [shape = 'u32[144,128]{1,0:T(1,128)}', space=vmem, size = 0x12000, scoped, tag = 'internal scratch']
  %s0 = inlined_call_operand.vmem [shape: f32[256,128], index: 0, kind: input, shape index: {}]
  %s1 = inlined_call_operand.vmem [shape: f32[1,128], index: 1, kind: input, shape index: {}]
  %s2 = inlined_call_operand.vmem [shape: bf16[128,512], index: 2, kind: input, shape index: {}]
  %s3 = inlined_call_operand.vmem [shape: f32[1,512], index: 3, kind: input, shape index: {}]
  %s4 = inlined_call_operand.vmem [shape: bf16[512,128], index: 4, kind: input, shape index: {}]
  %s5 = inlined_call_operand.vmem [shape: f32[2], index: 5, kind: input, shape index: {}]
  %s6 = inlined_call_operand.hbm [shape: f32[256,128], index: 6, kind: output, shape index: {}]
  %s7 = sld [smem:[#allocation0]]
  $region61: #{feedforward.1} parent=0
    _
  %s9 = ssub.s32 1, %s7
  %s10 = scalar_select 0, %s9, %s7
  $region1: #{feedforward.1} parent=0
    #allocation2 [shape = 'u8[512]{0}', space=smem, size = 0x200, scoped, tag = 'input window, operand 5, single buffered']
    #allocation3 [shape = 's32[2]{0}', space=sflag, size = 0x8, scoped, tag = 'scoped memory for feedforward.1']
    #allocation4 [shape = 's32[2]{0}', space=sflag, size = 0x8, scoped, tag = 'scoped memory for feedforward.1']
    #allocation5 [shape = 'u8[131072]{0}', space=vmem, size = 0x20000, scoped, tag = 'output window, operand 0']
    %11 = vsyncpa [#allocation4], 0
    %12 = vsyncpa [#allocation3], 0
    %s13 = scalar_lea.sflag [#allocation3], 1
    %14 = vsyncpa %s13, 0
    loop: start=0, step=1, limit=4
    $region2: #{feedforward.1} parent=1 // loop_pre_header
      _
    $region3: #{feedforward.1} parent=1 // loop_header
      %s16 = sphi 0, %s20
      %p17 = scmp.ge.s32.totalorder %s16, 4
      %s26 = sphi 0, %s28
      %s29 = sphi 0, %s26
      %s30 = sphi 0, %s29
      %s46 = sphi 0, %s30
      %s50 = sphi 0, %s50
      %s52 = sphi 0, %s50
      %s53 = sphi 0, %s52
      %s67 = sphi 0, %s53
      %s71 = sphi 0, %s71
      %s73 = sphi 0, %s71
      %s74 = sphi 0, %s73
      %s88 = sphi 0, %s74
      %s92 = sphi 0, %s92
      %s94 = sphi 0, %s92
      %s95 = sphi 0, %s94
      %s109 = sphi 0, %s95
      %s113 = sphi 0, %s113
      %s115 = sphi 0, %s113
      %s116 = sphi 0, %s115
      %s130 = sphi 0, %s116
      %s134 = sphi 0, %s134
      %s136 = sphi 0, %s134
      %s137 = sphi 0, %s136
      %s151 = sphi 0, %s137
      %s157 = sphi 0, %s159
      %s160 = sphi 0, %s157
      %s161 = sphi 0, %s160
      %s177 = sphi 0, %s161
    $region4: #{feedforward.1} parent=1 // loop_header_branch
      %19 = sbr.rel (%p17) target = $region8
    $region5: #{feedforward.1} parent=1 // loop_body
      %s21 = ssub.s32 %s16, 1
      %s22 = ssub.s32 %s16, 2
      %s23 = sadd.s32 %s16, 1
      %s24 = ssub.s32 %s16, %s23
      %p25 = scmp.eq.s32.totalorder %s24, 0
      %s27 = sadd.s32 %s26, 1
      %s28 = scalar_select %p25, %s26, %s27
      %p31 = pneg %p25
      %p32 = scmp.eq.s32.totalorder %s16, 1
      %p33 = por %p31, %p32
      %p34 = scmp.ne.s32.totalorder %s26, %s29
      %p35 = scmp.eq.s32.totalorder %s16, 0
      %p36 = por %p34, %p35
      %p37 = scmp.ne.s32.totalorder %s26, %s29
      %p38 = scmp.eq.s32.totalorder %s21, 1
      %p39 = por %p37, %p38
      %p40 = scmp.ne.s32.totalorder %s29, %s30
      %p41 = scmp.eq.s32.totalorder %s21, 0
      %p42 = por %p40, %p41
      %p43 = scmp.ne.s32.totalorder %s29, %s30
      %p44 = scmp.eq.s32.totalorder %s22, 1
      %p45 = por %p43, %p44
      %p47 = scmp.ne.s32.totalorder %s30, %s46
      %p48 = scmp.eq.s32.totalorder %s22, 0
      %p49 = por %p47, %p48
      %s51 = sadd.s32 %s50, 1
      %p54 = scmp.eq.s32.totalorder %s16, 1
      %p55 = scmp.ne.s32.totalorder %s50, %s52
      %p56 = scmp.eq.s32.totalorder %s16, 0
      %p57 = por %p55, %p56
      %p58 = scmp.ne.s32.totalorder %s50, %s52
      %p59 = scmp.eq.s32.totalorder %s21, 1
      %p60 = por %p58, %p59
      %p61 = scmp.ne.s32.totalorder %s52, %s53
      %p62 = scmp.eq.s32.totalorder %s21, 0
      %p63 = por %p61, %p62
      %p64 = scmp.ne.s32.totalorder %s52, %s53
      %p65 = scmp.eq.s32.totalorder %s22, 1
      %p66 = por %p64, %p65
      %p68 = scmp.ne.s32.totalorder %s53, %s67
      %p69 = scmp.eq.s32.totalorder %s22, 0
      %p70 = por %p68, %p69
      %s72 = sadd.s32 %s71, 1
      %p75 = scmp.eq.s32.totalorder %s16, 1
      %p76 = scmp.ne.s32.totalorder %s71, %s73
      %p77 = scmp.eq.s32.totalorder %s16, 0
      %p78 = por %p76, %p77
      %p79 = scmp.ne.s32.totalorder %s71, %s73
      %p80 = scmp.eq.s32.totalorder %s21, 1
      %p81 = por %p79, %p80
      %p82 = scmp.ne.s32.totalorder %s73, %s74
      %p83 = scmp.eq.s32.totalorder %s21, 0
      %p84 = por %p82, %p83
      %p85 = scmp.ne.s32.totalorder %s73, %s74
      %p86 = scmp.eq.s32.totalorder %s22, 1
      %p87 = por %p85, %p86
      %p89 = scmp.ne.s32.totalorder %s74, %s88
      %p90 = scmp.eq.s32.totalorder %s22, 0
      %p91 = por %p89, %p90
      %s93 = sadd.s32 %s92, 1
      %p96 = scmp.eq.s32.totalorder %s16, 1
      %p97 = scmp.ne.s32.totalorder %s92, %s94
      %p98 = scmp.eq.s32.totalorder %s16, 0
      %p99 = por %p97, %p98
      %p100 = scmp.ne.s32.totalorder %s92, %s94
      %p101 = scmp.eq.s32.totalorder %s21, 1
      %p102 = por %p100, %p101
      %p103 = scmp.ne.s32.totalorder %s94, %s95
      %p104 = scmp.eq.s32.totalorder %s21, 0
      %p105 = por %p103, %p104
      %p106 = scmp.ne.s32.totalorder %s94, %s95
      %p107 = scmp.eq.s32.totalorder %s22, 1
      %p108 = por %p106, %p107
      %p110 = scmp.ne.s32.totalorder %s95, %s109
      %p111 = scmp.eq.s32.totalorder %s22, 0
      %p112 = por %p110, %p111
      %s114 = sadd.s32 %s113, 1
      %p117 = scmp.eq.s32.totalorder %s16, 1
      %p118 = scmp.ne.s32.totalorder %s113, %s115
      %p119 = scmp.eq.s32.totalorder %s16, 0
      %p120 = por %p118, %p119
      %p121 = scmp.ne.s32.totalorder %s113, %s115
      %p122 = scmp.eq.s32.totalorder %s21, 1
      %p123 = por %p121, %p122
      %p124 = scmp.ne.s32.totalorder %s115, %s116
      %p125 = scmp.eq.s32.totalorder %s21, 0
      %p126 = por %p124, %p125
      %p127 = scmp.ne.s32.totalorder %s115, %s116
      %p128 = scmp.eq.s32.totalorder %s22, 1
      %p129 = por %p127, %p128
      %p131 = scmp.ne.s32.totalorder %s116, %s130
      %p132 = scmp.eq.s32.totalorder %s22, 0
      %p133 = por %p131, %p132
      %s135 = sadd.s32 %s134, 1
      %p138 = scmp.eq.s32.totalorder %s16, 1
      %p139 = scmp.ne.s32.totalorder %s134, %s136
      %p140 = scmp.eq.s32.totalorder %s16, 0
      %p141 = por %p139, %p140
      %p142 = scmp.ne.s32.totalorder %s134, %s136
      %p143 = scmp.eq.s32.totalorder %s21, 1
      %p144 = por %p142, %p143
      %p145 = scmp.ne.s32.totalorder %s136, %s137
      %p146 = scmp.eq.s32.totalorder %s21, 0
      %p147 = por %p145, %p146
      %p148 = scmp.ne.s32.totalorder %s136, %s137
      %p149 = scmp.eq.s32.totalorder %s22, 1
      %p150 = por %p148, %p149
      %p152 = scmp.ne.s32.totalorder %s137, %s151
      %p153 = scmp.eq.s32.totalorder %s22, 0
      %p154 = por %p152, %p153
      %s155 = ssub.s32 %s16, %s23
      %p156 = scmp.eq.s32.totalorder %s155, 0
      %s158 = sadd.s32 %s157, 1
      %s159 = scalar_select %p156, %s157, %s158
      %p162 = pneg %p156
      %p163 = scmp.eq.s32.totalorder %s16, 1
      %p164 = por %p162, %p163
      %p165 = scmp.ne.s32.totalorder %s157, %s160
      %p166 = scmp.eq.s32.totalorder %s16, 0
      %p167 = por %p165, %p166
      %p168 = scmp.ne.s32.totalorder %s157, %s160
      %p169 = scmp.eq.s32.totalorder %s21, 1
      %p170 = por %p168, %p169
      %p171 = scmp.ne.s32.totalorder %s160, %s161
      %p172 = scmp.eq.s32.totalorder %s21, 0
      %p173 = por %p171, %p172
      %p174 = scmp.ne.s32.totalorder %s160, %s161
      %p175 = scmp.eq.s32.totalorder %s22, 1
      %p176 = por %p174, %p175
      %p178 = scmp.ne.s32.totalorder %s161, %s177
      %p179 = scmp.eq.s32.totalorder %s22, 0
      %p180 = por %p178, %p179
      %p181 = scmp.le.s32.totalorder 1, %s16
      %p182 = scmp.lt.s32.totalorder %s16, 3
      %p183 = pnand %p181, %p182
      %p184 = pneg %p183
      // Predicated region
      $region9: #{feedforward.1} parent=5 // pred_check
        _
      $region10: #{feedforward.1} parent=5 // pred_check_branch
        %186 = sbr.rel (%p183) target = $region12
      $region11: #{feedforward.1} parent=5 // pred_region
        %s187 = ssub.s32 %s16, 1
        // Predicated region
        $region13: #{feedforward.1} parent=11 // pred_check
          %p188 = pneg %p63
        $region14: #{feedforward.1} parent=11 // pred_check_branch
          %190 = sbr.rel (%p188) target = $region16
        $region15: #{feedforward.1} parent=11 // pred_region
          _
        $region16: #{feedforward.1} parent=11 // pred_fallthru
          _
        // Predicated region
        $region17: #{feedforward.1} parent=11 // pred_check
          %p191 = pneg %p84
        $region18: #{feedforward.1} parent=11 // pred_check_branch
          %193 = sbr.rel (%p191) target = $region20
        $region19: #{feedforward.1} parent=11 // pred_region
          _
        $region20: #{feedforward.1} parent=11 // pred_fallthru
          _
        // Predicated region
        $region21: #{feedforward.1} parent=11 // pred_check
          %p194 = pneg %p105
        $region22: #{feedforward.1} parent=11 // pred_check_branch
          %196 = sbr.rel (%p194) target = $region24
        $region23: #{feedforward.1} parent=11 // pred_region
          _
        $region24: #{feedforward.1} parent=11 // pred_fallthru
          _
        // Predicated region
        $region25: #{feedforward.1} parent=11 // pred_check
          %p197 = pneg %p126
        $region26: #{feedforward.1} parent=11 // pred_check_branch
          %199 = sbr.rel (%p197) target = $region28
        $region27: #{feedforward.1} parent=11 // pred_region
          _
        $region28: #{feedforward.1} parent=11 // pred_fallthru
          _
        // Predicated region
        $region29: #{feedforward.1} parent=11 // pred_check
          %p200 = pneg %p147
        $region30: #{feedforward.1} parent=11 // pred_check_branch
          %202 = sbr.rel (%p200) target = $region32
        $region31: #{feedforward.1} parent=11 // pred_region
          %s204 = ssub.s32 16, 16
          %205 = vsyncadd [#allocation4], %s204
          %s207 = sshll.u32 %s5, 4
          %s208 = int_to_ptr.vmem [resolvable:$true] %s207
          %210 = dma.vmem_to_smem %s208, 16, [#allocation2], [#allocation4]
        $region32: #{feedforward.1} parent=11 // pred_fallthru
          _
      $region12: #{feedforward.1} parent=5 // pred_fallthru
        _
      %p211 = scmp.lt.s32.totalorder %s16, 2
      // Predicated region
      $region33: #{feedforward.1} parent=5 // pred_check
        %p212 = pneg %p211
      $region34: #{feedforward.1} parent=5 // pred_check_branch
        %214 = sbr.rel (%p212) target = $region36
      $region35: #{feedforward.1} parent=5 // pred_region
        // Predicated region
        $region37: #{feedforward.1} parent=35 // pred_check
          %p215 = pneg %p36
        $region38: #{feedforward.1} parent=35 // pred_check_branch
          %217 = sbr.rel (%p215) target = $region40
        $region39: #{feedforward.1} parent=35 // pred_region
          %s218 = smul.u32 16, %s16
          %p219 = scmp.lt.s32.totalorder %s218, 31
          %s220 = scalar_select %p219, %s218, 31
          %s221 = smul.addr %s220, 8
          %s222 = scalar_lea.vmem %s0, %s221
          %s223 = smul.u32 16, %s16
        $region40: #{feedforward.1} parent=35 // pred_fallthru
          _
      $region36: #{feedforward.1} parent=5 // pred_fallthru
        _
      %p224 = scmp.le.s32.totalorder 1, %s16
      %p225 = scmp.lt.s32.totalorder %s16, 3
      %p226 = pnand %p224, %p225
      %p227 = pneg %p226
      // Predicated region
      $region41: #{feedforward.1} parent=5 // pred_check
        _
      $region42: #{feedforward.1} parent=5 // pred_check_branch
        %229 = sbr.rel (%p226) target = $region44
      $region43: #{feedforward.1} parent=5 // pred_region
        %s230 = ssub.s32 %s16, 1
        // Predicated region
        $region45: #{feedforward.1} parent=43 // pred_check
          %p231 = pneg %p147
        $region46: #{feedforward.1} parent=43 // pred_check_branch
          %233 = sbr.rel (%p231) target = $region48
        $region47: #{feedforward.1} parent=43 // pred_region
          %234 = dma.done [#allocation4], 16
        $region48: #{feedforward.1} parent=43 // pred_fallthru
          _
        %235 = sfence
        %s236 = smul.u32 16, %s21
        %p237 = scmp.lt.s32.totalorder %s236, 31
        %s238 = scalar_select %p237, %s236, 31
        %s239 = smul.addr %s238, 8
        %s240 = scalar_lea.vmem %s0, %s239
        %p241 = pneg %p42
        %p242 = pneg %p39
        %p243 = pneg %p63
        %p244 = pneg %p60
        %p245 = pneg %p84
        %p246 = pneg %p81
        %p247 = pneg %p105
        %p248 = pneg %p102
        %p249 = pneg %p126
        %p250 = pneg %p123
        %p251 = pneg %p147
        %p252 = pneg %p144
        %p253 = pneg %p173
        %p254 = pneg %p170
        %s255 = sand.u32 %s160, 1
        %s256 = scalar_lea.sflag [#allocation3], %s255
        %s257 = sand.u32 %s160, 1
        %s258 = smul.addr %s257, 128
        %s259 = scalar_lea.vmem [#allocation5], %s258
        %s260 = smul.u32 16, %s21
        %p261 = scmp.lt.s32.totalorder %s260, 31
        %s262 = scalar_select %p261, %s260, 31
        %s263 = smul.addr %s262, 8
        %s264 = scalar_lea.vmem %s0, %s263
        %s265 = smul.u32 16, %s21
        %s266 = smul.u32 16, %s21
        %v268 = vld [vmem:[%s264] sm:$0xff]
        %v269 = vld [vmem:[%s264 + $0x8] sm:$0xff]
        %v270 = vld [vmem:[%s264 + $0x10] sm:$0xff]
        %v271 = vld [vmem:[%s264 + $0x18] sm:$0xff]
        %v272 = vld [vmem:[%s264 + $0x20] sm:$0xff]
        %v273 = vld [vmem:[%s264 + $0x28] sm:$0xff]
        %v274 = vld [vmem:[%s264 + $0x30] sm:$0xff]
        %v275 = vld [vmem:[%s264 + $0x38] sm:$0xff]
        %v276 = vld [vmem:[%s264 + $0x40] sm:$0xff]
        %v277 = vld [vmem:[%s264 + $0x48] sm:$0xff]
        %v278 = vld [vmem:[%s264 + $0x50] sm:$0xff]
        %v279 = vld [vmem:[%s264 + $0x58] sm:$0xff]
        %v280 = vld [vmem:[%s264 + $0x60] sm:$0xff]
        %v281 = vld [vmem:[%s264 + $0x68] sm:$0xff]
        %v282 = vld [vmem:[%s264 + $0x70] sm:$0xff]
        %v283 = vld [vmem:[%s264 + $0x78] sm:$0xff]
        %v284 = vld [vmem:[%s1] sm:$0x1]
        %v285 = vld [vmem:[%s2] sm:$0xff]
        %v286 = vld [vmem:[%s2 + $0x8] sm:$0xff]
        %v287 = vld [vmem:[%s2 + $0x10] sm:$0xff]
        %v288 = vld [vmem:[%s2 + $0x18] sm:$0xff]
        %v289 = vld [vmem:[%s2 + $0x20] sm:$0xff]
        %v290 = vld [vmem:[%s2 + $0x28] sm:$0xff]
        %v291 = vld [vmem:[%s2 + $0x30] sm:$0xff]
        %v292 = vld [vmem:[%s2 + $0x38] sm:$0xff]
        %v293 = vld [vmem:[%s2 + $0x40] sm:$0xff]
        %v294 = vld [vmem:[%s2 + $0x48] sm:$0xff]
        %v295 = vld [vmem:[%s2 + $0x50] sm:$0xff]
        %v296 = vld [vmem:[%s2 + $0x58] sm:$0xff]
        %v297 = vld [vmem:[%s2 + $0x60] sm:$0xff]
        %v298 = vld [vmem:[%s2 + $0x68] sm:$0xff]
        %v299 = vld [vmem:[%s2 + $0x70] sm:$0xff]
        %v300 = vld [vmem:[%s2 + $0x78] sm:$0xff]
        %v301 = vld [vmem:[%s2 + $0x80] sm:$0xff]
        %v302 = vld [vmem:[%s2 + $0x88] sm:$0xff]
        %v303 = vld [vmem:[%s2 + $0x90] sm:$0xff]
        %v304 = vld [vmem:[%s2 + $0x98] sm:$0xff]
        %v305 = vld [vmem:[%s2 + $0xa0] sm:$0xff]
        %v306 = vld [vmem:[%s2 + $0xa8] sm:$0xff]
        %v307 = vld [vmem:[%s2 + $0xb0] sm:$0xff]
        %v308 = vld [vmem:[%s2 + $0xb8] sm:$0xff]
        %v309 = vld [vmem:[%s2 + $0xc0] sm:$0xff]
        %v310 = vld [vmem:[%s2 + $0xc8] sm:$0xff]
        %v311 = vld [vmem:[%s2 + $0xd0] sm:$0xff]
        %v312 = vld [vmem:[%s2 + $0xd8] sm:$0xff]
        %v313 = vld [vmem:[%s2 + $0xe0] sm:$0xff]
        %v314 = vld [vmem:[%s2 + $0xe8] sm:$0xff]
        %v315 = vld [vmem:[%s2 + $0xf0] sm:$0xff]
        %v316 = vld [vmem:[%s2 + $0xf8] sm:$0xff]
        %s317 = sld [smem:[#allocation2]]
        %v318 = vmul.f32 %v268, %v268
        %v319 = vmul.f32 %v269, %v269
        %v320 = vmul.f32 %v270, %v270
        %v321 = vmul.f32 %v271, %v271
        %v322 = vmul.f32 %v272, %v272
        %v323 = vmul.f32 %v273, %v273
        %v324 = vmul.f32 %v274, %v274
        %v325 = vmul.f32 %v275, %v275
        %v326 = vmul.f32 %v276, %v276
        %v327 = vmul.f32 %v277, %v277
        %v328 = vmul.f32 %v278, %v278
        %v329 = vmul.f32 %v279, %v279
        %v330 = vmul.f32 %v280, %v280
        %v331 = vmul.f32 %v281, %v281
        %v332 = vmul.f32 %v282, %v282
        %v333 = vmul.f32 %v283, %v283
        %334 = vadd.xlane.f32.xlu0 %v318
        %v335 = vpop.xlane.xlu0 %334
        %336 = vadd.xlane.f32.xlu0 %v319
        %v337 = vpop.xlane.xlu0 %336
        %338 = vadd.xlane.f32.xlu0 %v320
        %v339 = vpop.xlane.xlu0 %338
        %340 = vadd.xlane.f32.xlu0 %v321
        %v341 = vpop.xlane.xlu0 %340
        %342 = vadd.xlane.f32.xlu0 %v322
        %v343 = vpop.xlane.xlu0 %342
        %344 = vadd.xlane.f32.xlu0 %v323
        %v345 = vpop.xlane.xlu0 %344
        %346 = vadd.xlane.f32.xlu0 %v324
        %v347 = vpop.xlane.xlu0 %346
        %348 = vadd.xlane.f32.xlu0 %v325
        %v349 = vpop.xlane.xlu0 %348
        %350 = vadd.xlane.f32.xlu0 %v326
        %v351 = vpop.xlane.xlu0 %350
        %352 = vadd.xlane.f32.xlu0 %v327
        %v353 = vpop.xlane.xlu0 %352
        %354 = vadd.xlane.f32.xlu0 %v328
        %v355 = vpop.xlane.xlu0 %354
        %356 = vadd.xlane.f32.xlu0 %v329
        %v357 = vpop.xlane.xlu0 %356
        %358 = vadd.xlane.f32.xlu0 %v330
        %v359 = vpop.xlane.xlu0 %358
        %360 = vadd.xlane.f32.xlu0 %v331
        %v361 = vpop.xlane.xlu0 %360
        %362 = vadd.xlane.f32.xlu0 %v332
        %v363 = vpop.xlane.xlu0 %362
        %364 = vadd.xlane.f32.xlu0 %v333
        %v365 = vpop.xlane.xlu0 %364
        %v366 = vrcp.pop 128.0
        %v367 = vmul.f32 %v335, %v366
        %v368 = vmul.f32 %v337, %v366
        %v369 = vmul.f32 %v339, %v366
        %v370 = vmul.f32 %v341, %v366
        %v371 = vmul.f32 %v343, %v366
        %v372 = vmul.f32 %v345, %v366
        %v373 = vmul.f32 %v347, %v366
        %v374 = vmul.f32 %v349, %v366
        %v375 = vmul.f32 %v351, %v366
        %v376 = vmul.f32 %v353, %v366
        %v377 = vmul.f32 %v355, %v366
        %v378 = vmul.f32 %v357, %v366
        %v379 = vmul.f32 %v359, %v366
        %v380 = vmul.f32 %v361, %v366
        %v381 = vmul.f32 %v363, %v366
        %v382 = vmul.f32 %v365, %v366
        %v383 = vadd.f32 %v367, 1e-06
        %v384 = vadd.f32 %v368, 1e-06
        %v385 = vadd.f32 %v369, 1e-06
        %v386 = vadd.f32 %v370, 1e-06
        %v387 = vadd.f32 %v371, 1e-06
        %v388 = vadd.f32 %v372, 1e-06
        %v389 = vadd.f32 %v373, 1e-06
        %v390 = vadd.f32 %v374, 1e-06
        %v391 = vadd.f32 %v375, 1e-06
        %v392 = vadd.f32 %v376, 1e-06
        %v393 = vadd.f32 %v377, 1e-06
        %v394 = vadd.f32 %v378, 1e-06
        %v395 = vadd.f32 %v379, 1e-06
        %v396 = vadd.f32 %v380, 1e-06
        %v397 = vadd.f32 %v381, 1e-06
        %v398 = vadd.f32 %v382, 1e-06
        %v399 = vrsqrt.pop %v383
        %v400 = vrsqrt.pop %v384
        %v401 = vrsqrt.pop %v385
        %v402 = vrsqrt.pop %v386
        %v403 = vrsqrt.pop %v387
        %v404 = vrsqrt.pop %v388
        %v405 = vrsqrt.pop %v389
        %v406 = vrsqrt.pop %v390
        %v407 = vrsqrt.pop %v391
        %v408 = vrsqrt.pop %v392
        %v409 = vrsqrt.pop %v393
        %v410 = vrsqrt.pop %v394
        %v411 = vrsqrt.pop %v395
        %v412 = vrsqrt.pop %v396
        %v413 = vrsqrt.pop %v397
        %v414 = vrsqrt.pop %v398
        %v415 = vmul.f32 %v268, %v399
        %v416 = vmul.f32 %v269, %v400
        %v417 = vmul.f32 %v270, %v401
        %v418 = vmul.f32 %v271, %v402
        %v419 = vmul.f32 %v272, %v403
        %v420 = vmul.f32 %v273, %v404
        %v421 = vmul.f32 %v274, %v405
        %v422 = vmul.f32 %v275, %v406
        %v423 = vmul.f32 %v276, %v407
        %v424 = vmul.f32 %v277, %v408
        %v425 = vmul.f32 %v278, %v409
        %v426 = vmul.f32 %v279, %v410
        %v427 = vmul.f32 %v280, %v411
        %v428 = vmul.f32 %v281, %v412
        %v429 = vmul.f32 %v282, %v413
        %v430 = vmul.f32 %v283, %v414
        %v432 = vlaneseq
        %v433 = vshrl.u32 %v432, 7
        %v434 = vsub.s32 0, %v433
        %v435 = vrot.slane %v284, %v434
        %v437 = vmul.f32 %v415, %v435
        %v438 = vmul.f32 %v416, %v435
        %v439 = vmul.f32 %v417, %v435
        %v440 = vmul.f32 %v418, %v435
        %v441 = vmul.f32 %v419, %v435
        %v442 = vmul.f32 %v420, %v435
        %v443 = vmul.f32 %v421, %v435
        %v444 = vmul.f32 %v422, %v435
        %v445 = vmul.f32 %v423, %v435
        %v446 = vmul.f32 %v424, %v435
        %v447 = vmul.f32 %v425, %v435
        %v448 = vmul.f32 %v426, %v435
        %v449 = vmul.f32 %v427, %v435
        %v450 = vmul.f32 %v428, %v435
        %v451 = vmul.f32 %v429, %v435
        %v452 = vmul.f32 %v430, %v435
        %v453 = vand.u32 2147483647, %v437
        %v454 = vand.u32 2147483647, %v438
        %v455 = vand.u32 2147483647, %v439
        %v456 = vand.u32 2147483647, %v440
        %v457 = vand.u32 2147483647, %v441
        %v458 = vand.u32 2147483647, %v442
        %v459 = vand.u32 2147483647, %v443
        %v460 = vand.u32 2147483647, %v444
        %v461 = vand.u32 2147483647, %v445
        %v462 = vand.u32 2147483647, %v446
        %v463 = vand.u32 2147483647, %v447
        %v464 = vand.u32 2147483647, %v448
        %v465 = vand.u32 2147483647, %v449
        %v466 = vand.u32 2147483647, %v450
        %v467 = vand.u32 2147483647, %v451
        %v468 = vand.u32 2147483647, %v452
        %469 = vmax.xlane.f32.xlu0 %v453
        %v470 = vpop.xlane.xlu0 %469
        %471 = vmax.xlane.f32.xlu0 %v454
        %v472 = vpop.xlane.xlu0 %471
        %473 = vmax.xlane.f32.xlu0 %v455
        %v474 = vpop.xlane.xlu0 %473
        %475 = vmax.xlane.f32.xlu0 %v456
        %v476 = vpop.xlane.xlu0 %475
        %477 = vmax.xlane.f32.xlu0 %v457
        %v478 = vpop.xlane.xlu0 %477
        %479 = vmax.xlane.f32.xlu0 %v458
        %v480 = vpop.xlane.xlu0 %479
        %481 = vmax.xlane.f32.xlu0 %v459
        %v482 = vpop.xlane.xlu0 %481
        %483 = vmax.xlane.f32.xlu0 %v460
        %v484 = vpop.xlane.xlu0 %483
        %485 = vmax.xlane.f32.xlu0 %v461
        %v486 = vpop.xlane.xlu0 %485
        %487 = vmax.xlane.f32.xlu0 %v462
        %v488 = vpop.xlane.xlu0 %487
        %489 = vmax.xlane.f32.xlu0 %v463
        %v490 = vpop.xlane.xlu0 %489
        %491 = vmax.xlane.f32.xlu0 %v464
        %v492 = vpop.xlane.xlu0 %491
        %493 = vmax.xlane.f32.xlu0 %v465
        %v494 = vpop.xlane.xlu0 %493
        %495 = vmax.xlane.f32.xlu0 %v466
        %v496 = vpop.xlane.xlu0 %495
        %497 = vmax.xlane.f32.xlu0 %v467
        %v498 = vpop.xlane.xlu0 %497
        %499 = vmax.xlane.f32.xlu0 %v468
        %v500 = vpop.xlane.xlu0 %499
        %v501 = vmax.f32 %v470, 1e-05
        %v502 = vmax.f32 %v472, 1e-05
        %v503 = vmax.f32 %v474, 1e-05
        %v504 = vmax.f32 %v476, 1e-05
        %v505 = vmax.f32 %v478, 1e-05
        %v506 = vmax.f32 %v480, 1e-05
        %v507 = vmax.f32 %v482, 1e-05
        %v508 = vmax.f32 %v484, 1e-05
        %v509 = vmax.f32 %v486, 1e-05
        %v510 = vmax.f32 %v488, 1e-05
        %v511 = vmax.f32 %v490, 1e-05
        %v512 = vmax.f32 %v492, 1e-05
        %v513 = vmax.f32 %v494, 1e-05
        %v514 = vmax.f32 %v496, 1e-05
        %v515 = vmax.f32 %v498, 1e-05
        %v516 = vmax.f32 %v500, 1e-05
        %v517 = vrcp.pop %v501
        %v518 = vmul.f32 127.0, %v517
        %v519 = vrcp.pop %v502
        %v520 = vmul.f32 127.0, %v519
        %v521 = vrcp.pop %v503
        %v522 = vmul.f32 127.0, %v521
        %v523 = vrcp.pop %v504
        %v524 = vmul.f32 127.0, %v523
        %v525 = vrcp.pop %v505
        %v526 = vmul.f32 127.0, %v525
        %v527 = vrcp.pop %v506
        %v528 = vmul.f32 127.0, %v527
        %v529 = vrcp.pop %v507
        %v530 = vmul.f32 127.0, %v529
        %v531 = vrcp.pop %v508
        %v532 = vmul.f32 127.0, %v531
        %v533 = vrcp.pop %v509
        %v534 = vmul.f32 127.0, %v533
        %v535 = vrcp.pop %v510
        %v536 = vmul.f32 127.0, %v535
        %v537 = vrcp.pop %v511
        %v538 = vmul.f32 127.0, %v537
        %v539 = vrcp.pop %v512
        %v540 = vmul.f32 127.0, %v539
        %v541 = vrcp.pop %v513
        %v542 = vmul.f32 127.0, %v541
        %v543 = vrcp.pop %v514
        %v544 = vmul.f32 127.0, %v543
        %v545 = vrcp.pop %v515
        %v546 = vmul.f32 127.0, %v545
        %v547 = vrcp.pop %v516
        %v548 = vmul.f32 127.0, %v547
        %v549 = vmul.f32 %v437, %v518
        %v550 = vmul.f32 %v438, %v520
        %v551 = vmul.f32 %v439, %v522
        %v552 = vmul.f32 %v440, %v524
        %v553 = vmul.f32 %v441, %v526
        %v554 = vmul.f32 %v442, %v528
        %v555 = vmul.f32 %v443, %v530
        %v556 = vmul.f32 %v444, %v532
        %v557 = vmul.f32 %v445, %v534
        %v558 = vmul.f32 %v446, %v536
        %v559 = vmul.f32 %v447, %v538
        %v560 = vmul.f32 %v448, %v540
        %v561 = vmul.f32 %v449, %v542
        %v562 = vmul.f32 %v450, %v544
        %v563 = vmul.f32 %v451, %v546
        %v564 = vmul.f32 %v452, %v548
        %v565 = vround.ne.pseudo %v549
        %v566 = vround.ne.pseudo %v550
        %v567 = vround.ne.pseudo %v551
        %v568 = vround.ne.pseudo %v552
        %v569 = vround.ne.pseudo %v553
        %v570 = vround.ne.pseudo %v554
        %v571 = vround.ne.pseudo %v555
        %v572 = vround.ne.pseudo %v556
        %v573 = vround.ne.pseudo %v557
        %v574 = vround.ne.pseudo %v558
        %v575 = vround.ne.pseudo %v559
        %v576 = vround.ne.pseudo %v560
        %v577 = vround.ne.pseudo %v561
        %v578 = vround.ne.pseudo %v562
        %v579 = vround.ne.pseudo %v563
        %v580 = vround.ne.pseudo %v564
        %v581 = vmax.f32 %v565, -128.0
        %v582 = vmax.f32 %v566, -128.0
        %v583 = vmax.f32 %v567, -128.0
        %v584 = vmax.f32 %v568, -128.0
        %v585 = vmax.f32 %v569, -128.0
        %v586 = vmax.f32 %v570, -128.0
        %v587 = vmax.f32 %v571, -128.0
        %v588 = vmax.f32 %v572, -128.0
        %v589 = vmax.f32 %v573, -128.0
        %v590 = vmax.f32 %v574, -128.0
        %v591 = vmax.f32 %v575, -128.0
        %v592 = vmax.f32 %v576, -128.0
        %v593 = vmax.f32 %v577, -128.0
        %v594 = vmax.f32 %v578, -128.0
        %v595 = vmax.f32 %v579, -128.0
        %v596 = vmax.f32 %v580, -128.0
        %v597 = vmin.f32 %v581, 127.0
        %v598 = vmin.f32 %v582, 127.0
        %v599 = vmin.f32 %v583, 127.0
        %v600 = vmin.f32 %v584, 127.0
        %v601 = vmin.f32 %v585, 127.0
        %v602 = vmin.f32 %v586, 127.0
        %v603 = vmin.f32 %v587, 127.0
        %v604 = vmin.f32 %v588, 127.0
        %v605 = vmin.f32 %v589, 127.0
        %v606 = vmin.f32 %v590, 127.0
        %v607 = vmin.f32 %v591, 127.0
        %v608 = vmin.f32 %v592, 127.0
        %v609 = vmin.f32 %v593, 127.0
        %v610 = vmin.f32 %v594, 127.0
        %v611 = vmin.f32 %v595, 127.0
        %v612 = vmin.f32 %v596, 127.0
        %v613 = vpack.c.bf16 %v598, %v597
        %v614 = vpack.c.bf16 %v600, %v599
        %v615 = vpack.c.bf16 %v602, %v601
        %v616 = vpack.c.bf16 %v604, %v603
        %v617 = vpack.c.bf16 %v606, %v605
        %v618 = vpack.c.bf16 %v608, %v607
        %v619 = vpack.c.bf16 %v610, %v609
        %v620 = vpack.c.bf16 %v612, %v611
        %v653 = vunpack.c.l.b16 %v285
        %v654 = vunpack.c.h.b16 %v285
        %v655 = vunpack.c.l.b16 %v286
        %v656 = vunpack.c.h.b16 %v286
        %v657 = vunpack.c.l.b16 %v287
        %v658 = vunpack.c.h.b16 %v287
        %v659 = vunpack.c.l.b16 %v288
        %v660 = vunpack.c.h.b16 %v288
        %v661 = vunpack.c.l.b16 %v289
        %v662 = vunpack.c.h.b16 %v289
        %v663 = vunpack.c.l.b16 %v290
        %v664 = vunpack.c.h.b16 %v290
        %v665 = vunpack.c.l.b16 %v291
        %v666 = vunpack.c.h.b16 %v291
        %v667 = vunpack.c.l.b16 %v292
        %v668 = vunpack.c.h.b16 %v292
        %v669 = vunpack.c.l.b16 %v293
        %v670 = vunpack.c.h.b16 %v293
        %v671 = vunpack.c.l.b16 %v294
        %v672 = vunpack.c.h.b16 %v294
        %v673 = vunpack.c.l.b16 %v295
        %v674 = vunpack.c.h.b16 %v295
        %v675 = vunpack.c.l.b16 %v296
        %v676 = vunpack.c.h.b16 %v296
        %v677 = vunpack.c.l.b16 %v297
        %v678 = vunpack.c.h.b16 %v297
        %v679 = vunpack.c.l.b16 %v298
        %v680 = vunpack.c.h.b16 %v298
        %v681 = vunpack.c.l.b16 %v299
        %v682 = vunpack.c.h.b16 %v299
        %v683 = vunpack.c.l.b16 %v300
        %v684 = vunpack.c.h.b16 %v300
        %v685 = vunpack.c.l.b16 %v301
        %v686 = vunpack.c.h.b16 %v301
        %v687 = vunpack.c.l.b16 %v302
        %v688 = vunpack.c.h.b16 %v302
        %v689 = vunpack.c.l.b16 %v303
        %v690 = vunpack.c.h.b16 %v303
        %v691 = vunpack.c.l.b16 %v304
        %v692 = vunpack.c.h.b16 %v304
        %v693 = vunpack.c.l.b16 %v305
        %v694 = vunpack.c.h.b16 %v305
        %v695 = vunpack.c.l.b16 %v306
        %v696 = vunpack.c.h.b16 %v306
        %v697 = vunpack.c.l.b16 %v307
        %v698 = vunpack.c.h.b16 %v307
        %v699 = vunpack.c.l.b16 %v308
        %v700 = vunpack.c.h.b16 %v308
        %v701 = vunpack.c.l.b16 %v309
        %v702 = vunpack.c.h.b16 %v309
        %v703 = vunpack.c.l.b16 %v310
        %v704 = vunpack.c.h.b16 %v310
        %v705 = vunpack.c.l.b16 %v311
        %v706 = vunpack.c.h.b16 %v311
        %v707 = vunpack.c.l.b16 %v312
        %v708 = vunpack.c.h.b16 %v312
        %v709 = vunpack.c.l.b16 %v313
        %v710 = vunpack.c.h.b16 %v313
        %v711 = vunpack.c.l.b16 %v314
        %v712 = vunpack.c.h.b16 %v314
        %v713 = vunpack.c.l.b16 %v315
        %v714 = vunpack.c.h.b16 %v315
        %v715 = vunpack.c.l.b16 %v316
        %v716 = vunpack.c.h.b16 %v316
        %v717 = vpack.c.b16 %v657, %v653
        %v718 = vpack.c.b16 %v658, %v654
        %v719 = vpack.c.b16 %v659, %v655
        %v720 = vpack.c.b16 %v660, %v656
        %v721 = vpack.c.b16 %v665, %v661
        %v722 = vpack.c.b16 %v666, %v662
        %v723 = vpack.c.b16 %v667, %v663
        %v724 = vpack.c.b16 %v668, %v664
        %v725 = vpack.c.b16 %v673, %v669
        %v726 = vpack.c.b16 %v674, %v670
        %v727 = vpack.c.b16 %v675, %v671
        %v728 = vpack.c.b16 %v676, %v672
        %v729 = vpack.c.b16 %v681, %v677
        %v730 = vpack.c.b16 %v682, %v678
        %v731 = vpack.c.b16 %v683, %v679
        %v732 = vpack.c.b16 %v684, %v680
        %v733 = vpack.c.b16 %v689, %v685
        %v734 = vpack.c.b16 %v690, %v686
        %v735 = vpack.c.b16 %v691, %v687
        %v736 = vpack.c.b16 %v692, %v688
        %v737 = vpack.c.b16 %v697, %v693
        %v738 = vpack.c.b16 %v698, %v694
        %v739 = vpack.c.b16 %v699, %v695
        %v740 = vpack.c.b16 %v700, %v696
        %v741 = vpack.c.b16 %v705, %v701
        %v742 = vpack.c.b16 %v706, %v702
        %v743 = vpack.c.b16 %v707, %v703
        %v744 = vpack.c.b16 %v708, %v704
        %v745 = vpack.c.b16 %v713, %v709
        %v746 = vpack.c.b16 %v714, %v710
        %v747 = vpack.c.b16 %v715, %v711
        %v748 = vpack.c.b16 %v716, %v712
        %781 = vmatprep.subr.bf16.mxu0 %v746
        %782 = vmatpush1.bf16.msra.mxu0 %v745
        %783 = vmatprep.subr.bf16.mxu0 %v742
        %784 = vmatpush1.bf16.msra.mxu0 %v741
        %785 = vmatprep.subr.bf16.mxu0 %v738
        %786 = vmatpush1.bf16.msra.mxu0 %v737
        %787 = vmatprep.subr.bf16.mxu0 %v734
        %788 = vmatpush1.bf16.msra.mxu0 %v733
        %789 = vmatprep.subr.bf16.mxu0 %v730
        %790 = vmatpush1.bf16.msra.mxu0 %v729
        %791 = vmatprep.subr.bf16.mxu0 %v726
        %792 = vmatpush1.bf16.msra.mxu0 %v725
        %793 = vmatprep.subr.bf16.mxu0 %v722
        %794 = vmatpush1.bf16.msra.mxu0 %v721
        %795 = vmatprep.subr.bf16.mxu0 %v718
        %796 = vmatpush1.bf16.msra.mxu0 %v717
        %797 = vmatprep.subr.bf16.mxu0 0
        %798 = vmatpush2.bf16.msra.mxu0 0
        %799 = vmatprep.subr.bf16.mxu0 0
        %800 = vmatpush2.bf16.msra.mxu0 0
        %801 = vmatprep.subr.bf16.mxu0 0
        %802 = vmatpush2.bf16.msra.mxu0 0
        %803 = vmatprep.subr.bf16.mxu0 0
        %804 = vmatpush2.bf16.msra.mxu0 0
        %805 = vmatprep.subr.bf16.mxu0 0
        %806 = vmatpush2.bf16.msra.mxu0 0
        %807 = vmatprep.subr.bf16.mxu0 0
        %808 = vmatpush2.bf16.msra.mxu0 0
        %809 = vmatprep.subr.bf16.mxu0 0
        %810 = vmatpush2.bf16.msra.mxu0 0
        %811 = vmatprep.subr.bf16.mxu0 0
        %812 = vmatpush2.bf16.msra.mxu0 0
        %813 = vmatprep.mubr.bf16.mxu0 0
        %814 = vmatmul.mubr.bf16.gmra.mxu0 %v613
        %v815 = vpop.f32.mrf.mxu0
        %v816 = vadd.f32 0.0, %v815
        %v817 = vpop.f32.mrf.mxu0
        %v818 = vadd.f32 0.0, %v817
        %v819 = vpop.f32.mrf.mxu0
        %v820 = vadd.f32 0.0, %v819
        %v821 = vpop.f32.mrf.mxu0
        %v822 = vadd.f32 0.0, %v821
        %823 = vmatprep.mubr.bf16.mxu0 0
        %824 = vmatmul.mubr.bf16.gmra.mxu0 %v614
        %v825 = vpop.f32.mrf.mxu0
        %v826 = vadd.f32 0.0, %v825
        %v827 = vpop.f32.mrf.mxu0
        %v828 = vadd.f32 0.0, %v827
        %v829 = vpop.f32.mrf.mxu0
        %v830 = vadd.f32 0.0, %v829
        %v831 = vpop.f32.mrf.mxu0
        %v832 = vadd.f32 0.0, %v831
        %833 = vmatprep.mubr.bf16.mxu0 0
        %834 = vmatmul.mubr.bf16.gmra.mxu0 %v615
        %v835 = vpop.f32.mrf.mxu0
        %v836 = vadd.f32 0.0, %v835
        %v837 = vpop.f32.mrf.mxu0
        %v838 = vadd.f32 0.0, %v837
        %v839 = vpop.f32.mrf.mxu0
        %v840 = vadd.f32 0.0, %v839
        %v841 = vpop.f32.mrf.mxu0
        %v842 = vadd.f32 0.0, %v841
        %843 = vmatprep.mubr.bf16.mxu0 0
        %844 = vmatmul.mubr.bf16.gmra.mxu0 %v616
        %v845 = vpop.f32.mrf.mxu0
        %v846 = vadd.f32 0.0, %v845
        %v847 = vpop.f32.mrf.mxu0
        %v848 = vadd.f32 0.0, %v847
        %v849 = vpop.f32.mrf.mxu0
        %v850 = vadd.f32 0.0, %v849
        %v851 = vpop.f32.mrf.mxu0
        %v852 = vadd.f32 0.0, %v851
        %853 = vmatprep.mubr.bf16.mxu0 0
        %854 = vmatmul.mubr.bf16.gmra.mxu0 %v617
        %v855 = vpop.f32.mrf.mxu0
        %v856 = vadd.f32 0.0, %v855
        %v857 = vpop.f32.mrf.mxu0
        %v858 = vadd.f32 0.0, %v857
        %v859 = vpop.f32.mrf.mxu0
        %v860 = vadd.f32 0.0, %v859
        %v861 = vpop.f32.mrf.mxu0
        %v862 = vadd.f32 0.0, %v861
        %863 = vmatprep.mubr.bf16.mxu0 0
        %864 = vmatmul.mubr.bf16.gmra.mxu0 %v618
        %v865 = vpop.f32.mrf.mxu0
        %v866 = vadd.f32 0.0, %v865
        %v867 = vpop.f32.mrf.mxu0
        %v868 = vadd.f32 0.0, %v867
        %v869 = vpop.f32.mrf.mxu0
        %v870 = vadd.f32 0.0, %v869
        %v871 = vpop.f32.mrf.mxu0
        %v872 = vadd.f32 0.0, %v871
        %873 = vmatprep.mubr.bf16.mxu0 0
        %874 = vmatmul.mubr.bf16.gmra.mxu0 %v619
        %v875 = vpop.f32.mrf.mxu0
        %v876 = vadd.f32 0.0, %v875
        %v877 = vpop.f32.mrf.mxu0
        %v878 = vadd.f32 0.0, %v877
        %v879 = vpop.f32.mrf.mxu0
        %v880 = vadd.f32 0.0, %v879
        %v881 = vpop.f32.mrf.mxu0
        %v882 = vadd.f32 0.0, %v881
        %883 = vmatprep.mubr.bf16.mxu0 0
        %884 = vmatmul.mubr.bf16.gmra.mxu0 %v620
        %v885 = vpop.f32.mrf.mxu0
        %v886 = vadd.f32 0.0, %v885
        %v887 = vpop.f32.mrf.mxu0
        %v888 = vadd.f32 0.0, %v887
        %v889 = vpop.f32.mrf.mxu0
        %v890 = vadd.f32 0.0, %v889
        %v891 = vpop.f32.mrf.mxu0
        %v892 = vadd.f32 0.0, %v891
        %893 = vdwg.mxu0
        %894 = vmatprep.subr.bf16.mxu0 %v748
        %895 = vmatpush1.bf16.msra.mxu0 %v747
        %896 = vmatprep.subr.bf16.mxu0 %v744
        %897 = vmatpush1.bf16.msra.mxu0 %v743
        %898 = vmatprep.subr.bf16.mxu0 %v740
        %899 = vmatpush1.bf16.msra.mxu0 %v739
        %900 = vmatprep.subr.bf16.mxu0 %v736
        %901 = vmatpush1.bf16.msra.mxu0 %v735
        %902 = vmatprep.subr.bf16.mxu0 %v732
        %903 = vmatpush1.bf16.msra.mxu0 %v731
        %904 = vmatprep.subr.bf16.mxu0 %v728
        %905 = vmatpush1.bf16.msra.mxu0 %v727
        %906 = vmatprep.subr.bf16.mxu0 %v724
        %907 = vmatpush1.bf16.msra.mxu0 %v723
        %908 = vmatprep.subr.bf16.mxu0 %v720
        %909 = vmatpush1.bf16.msra.mxu0 %v719
        %910 = vmatprep.subr.bf16.mxu0 0
        %911 = vmatpush2.bf16.msra.mxu0 0
        %912 = vmatprep.subr.bf16.mxu0 0
        %913 = vmatpush2.bf16.msra.mxu0 0
        %914 = vmatprep.subr.bf16.mxu0 0
        %915 = vmatpush2.bf16.msra.mxu0 0
        %916 = vmatprep.subr.bf16.mxu0 0
        %917 = vmatpush2.bf16.msra.mxu0 0
        %918 = vmatprep.subr.bf16.mxu0 0
        %919 = vmatpush2.bf16.msra.mxu0 0
        %920 = vmatprep.subr.bf16.mxu0 0
        %921 = vmatpush2.bf16.msra.mxu0 0
        %922 = vmatprep.subr.bf16.mxu0 0
        %923 = vmatpush2.bf16.msra.mxu0 0
        %924 = vmatprep.subr.bf16.mxu0 0
        %925 = vmatpush2.bf16.msra.mxu0 0
        %926 = vmatprep.mubr.bf16.mxu0 0
        %927 = vmatmul.mubr.bf16.gmra.mxu0 %v613
        %v928 = vpop.f32.mrf.mxu0
        %v929 = vadd.f32 0.0, %v928
        %v930 = vpop.f32.mrf.mxu0
        %v931 = vadd.f32 0.0, %v930
        %v932 = vpop.f32.mrf.mxu0
        %v933 = vadd.f32 0.0, %v932
        %v934 = vpop.f32.mrf.mxu0
        %v935 = vadd.f32 0.0, %v934
        %936 = vmatprep.mubr.bf16.mxu0 0
        %937 = vmatmul.mubr.bf16.gmra.mxu0 %v614
        %v938 = vpop.f32.mrf.mxu0
        %v939 = vadd.f32 0.0, %v938
        %v940 = vpop.f32.mrf.mxu0
        %v941 = vadd.f32 0.0, %v940
        %v942 = vpop.f32.mrf.mxu0
        %v943 = vadd.f32 0.0, %v942
        %v944 = vpop.f32.mrf.mxu0
        %v945 = vadd.f32 0.0, %v944
        %946 = vmatprep.mubr.bf16.mxu0 0
        %947 = vmatmul.mubr.bf16.gmra.mxu0 %v615
        %v948 = vpop.f32.mrf.mxu0
        %v949 = vadd.f32 0.0, %v948
        %v950 = vpop.f32.mrf.mxu0
        %v951 = vadd.f32 0.0, %v950
        %v952 = vpop.f32.mrf.mxu0
        %v953 = vadd.f32 0.0, %v952
        %v954 = vpop.f32.mrf.mxu0
        %v955 = vadd.f32 0.0, %v954
        %956 = vmatprep.mubr.bf16.mxu0 0
        %957 = vmatmul.mubr.bf16.gmra.mxu0 %v616
        %v958 = vpop.f32.mrf.mxu0
        %v959 = vadd.f32 0.0, %v958
        %v960 = vpop.f32.mrf.mxu0
        %v961 = vadd.f32 0.0, %v960
        %v962 = vpop.f32.mrf.mxu0
        %v963 = vadd.f32 0.0, %v962
        %v964 = vpop.f32.mrf.mxu0
        %v965 = vadd.f32 0.0, %v964
        %966 = vmatprep.mubr.bf16.mxu0 0
        %967 = vmatmul.mubr.bf16.gmra.mxu0 %v617
        %v968 = vpop.f32.mrf.mxu0
        %v969 = vadd.f32 0.0, %v968
        %v970 = vpop.f32.mrf.mxu0
        %v971 = vadd.f32 0.0, %v970
        %v972 = vpop.f32.mrf.mxu0
        %v973 = vadd.f32 0.0, %v972
        %v974 = vpop.f32.mrf.mxu0
        %v975 = vadd.f32 0.0, %v974
        %976 = vmatprep.mubr.bf16.mxu0 0
        %977 = vmatmul.mubr.bf16.gmra.mxu0 %v618
        %v978 = vpop.f32.mrf.mxu0
        %v979 = vadd.f32 0.0, %v978
        %v980 = vpop.f32.mrf.mxu0
        %v981 = vadd.f32 0.0, %v980
        %v982 = vpop.f32.mrf.mxu0
        %v983 = vadd.f32 0.0, %v982
        %v984 = vpop.f32.mrf.mxu0
        %v985 = vadd.f32 0.0, %v984
        %986 = vmatprep.mubr.bf16.mxu0 0
        %987 = vmatmul.mubr.bf16.gmra.mxu0 %v619
        %v988 = vpop.f32.mrf.mxu0
        %v989 = vadd.f32 0.0, %v988
        %v990 = vpop.f32.mrf.mxu0
        %v991 = vadd.f32 0.0, %v990
        %v992 = vpop.f32.mrf.mxu0
        %v993 = vadd.f32 0.0, %v992
        %v994 = vpop.f32.mrf.mxu0
        %v995 = vadd.f32 0.0, %v994
        %996 = vmatprep.mubr.bf16.mxu0 0
        %997 = vmatmul.mubr.bf16.gmra.mxu0 %v620
        %v998 = vpop.f32.mrf.mxu0
        %v999 = vadd.f32 0.0, %v998
        %v1000 = vpop.f32.mrf.mxu0
        %v1001 = vadd.f32 0.0, %v1000
        %v1002 = vpop.f32.mrf.mxu0
        %v1003 = vadd.f32 0.0, %v1002
        %v1004 = vpop.f32.mrf.mxu0
        %v1005 = vadd.f32 0.0, %v1004
        %1006 = vdwg.mxu0
        %v1007 = vstv %s317
        %v1008 = vmul.f32 %v501, %v1007
        %v1009 = vmul.f32 %v502, %v1007
        %v1010 = vmul.f32 %v503, %v1007
        %v1011 = vmul.f32 %v504, %v1007
        %v1012 = vmul.f32 %v505, %v1007
        %v1013 = vmul.f32 %v506, %v1007
        %v1014 = vmul.f32 %v507, %v1007
        %v1015 = vmul.f32 %v508, %v1007
        %v1016 = vmul.f32 %v509, %v1007
        %v1017 = vmul.f32 %v510, %v1007
        %v1018 = vmul.f32 %v511, %v1007
        %v1019 = vmul.f32 %v512, %v1007
        %v1020 = vmul.f32 %v513, %v1007
        %v1021 = vmul.f32 %v514, %v1007
        %v1022 = vmul.f32 %v515, %v1007
        %v1023 = vmul.f32 %v516, %v1007
        %v1024 = vmul.f32 %v816, %v1008
        %v1025 = vmul.f32 %v818, %v1008
        %v1026 = vmul.f32 %v929, %v1008
        %v1027 = vmul.f32 %v931, %v1008
        %v1028 = vmul.f32 %v820, %v1009
        %v1029 = vmul.f32 %v822, %v1009
        %v1030 = vmul.f32 %v933, %v1009
        %v1031 = vmul.f32 %v935, %v1009
        %v1032 = vmul.f32 %v826, %v1010
        %v1033 = vmul.f32 %v828, %v1010
        %v1034 = vmul.f32 %v939, %v1010
        %v1035 = vmul.f32 %v941, %v1010
        %v1036 = vmul.f32 %v830, %v1011
        %v1037 = vmul.f32 %v832, %v1011
        %v1038 = vmul.f32 %v943, %v1011
        %v1039 = vmul.f32 %v945, %v1011
        %v1040 = vmul.f32 %v836, %v1012
        %v1041 = vmul.f32 %v838, %v1012
        %v1042 = vmul.f32 %v949, %v1012
        %v1043 = vmul.f32 %v951, %v1012
        %v1044 = vmul.f32 %v840, %v1013
        %v1045 = vmul.f32 %v842, %v1013
        %v1046 = vmul.f32 %v953, %v1013
        %v1047 = vmul.f32 %v955, %v1013
        %v1048 = vmul.f32 %v846, %v1014
        %v1049 = vmul.f32 %v848, %v1014
        %v1050 = vmul.f32 %v959, %v1014
        %v1051 = vmul.f32 %v961, %v1014
        %v1052 = vmul.f32 %v850, %v1015
        %v1053 = vmul.f32 %v852, %v1015
        %v1054 = vmul.f32 %v963, %v1015
        %v1055 = vmul.f32 %v965, %v1015
        %v1056 = vmul.f32 %v856, %v1016
        %v1057 = vmul.f32 %v858, %v1016
        %v1058 = vmul.f32 %v969, %v1016
        %v1059 = vmul.f32 %v971, %v1016
        %v1060 = vmul.f32 %v860, %v1017
        %v1061 = vmul.f32 %v862, %v1017
        %v1062 = vmul.f32 %v973, %v1017
        %v1063 = vmul.f32 %v975, %v1017
        %v1064 = vmul.f32 %v866, %v1018
        %v1065 = vmul.f32 %v868, %v1018
        %v1066 = vmul.f32 %v979, %v1018
        %v1067 = vmul.f32 %v981, %v1018
        %v1068 = vmul.f32 %v870, %v1019
        %v1069 = vmul.f32 %v872, %v1019
        %v1070 = vmul.f32 %v983, %v1019
        %v1071 = vmul.f32 %v985, %v1019
        %v1072 = vmul.f32 %v876, %v1020
        %v1073 = vmul.f32 %v878, %v1020
        %v1074 = vmul.f32 %v989, %v1020
        %v1075 = vmul.f32 %v991, %v1020
        %v1076 = vmul.f32 %v880, %v1021
        %v1077 = vmul.f32 %v882, %v1021
        %v1078 = vmul.f32 %v993, %v1021
        %v1079 = vmul.f32 %v995, %v1021
        %v1080 = vmul.f32 %v886, %v1022
        %v1081 = vmul.f32 %v888, %v1022
        %v1082 = vmul.f32 %v999, %v1022
        %v1083 = vmul.f32 %v1001, %v1022
        %v1084 = vmul.f32 %v890, %v1023
        %v1085 = vmul.f32 %v892, %v1023
        %v1086 = vmul.f32 %v1003, %v1023
        %v1087 = vmul.f32 %v1005, %v1023
        %v1088 = vmax.f32 %v1024, 0.0
        %v1089 = vmax.f32 %v1025, 0.0
        %v1090 = vmax.f32 %v1026, 0.0
        %v1091 = vmax.f32 %v1027, 0.0
        %v1092 = vmax.f32 %v1028, 0.0
        %v1093 = vmax.f32 %v1029, 0.0
        %v1094 = vmax.f32 %v1030, 0.0
        %v1095 = vmax.f32 %v1031, 0.0
        %v1096 = vmax.f32 %v1032, 0.0
        %v1097 = vmax.f32 %v1033, 0.0
        %v1098 = vmax.f32 %v1034, 0.0
        %v1099 = vmax.f32 %v1035, 0.0
        %v1100 = vmax.f32 %v1036, 0.0
        %v1101 = vmax.f32 %v1037, 0.0
        %v1102 = vmax.f32 %v1038, 0.0
        %v1103 = vmax.f32 %v1039, 0.0
        %v1104 = vmax.f32 %v1040, 0.0
        %v1105 = vmax.f32 %v1041, 0.0
        %v1106 = vmax.f32 %v1042, 0.0
        %v1107 = vmax.f32 %v1043, 0.0
        %v1108 = vmax.f32 %v1044, 0.0
        %v1109 = vmax.f32 %v1045, 0.0
        %v1110 = vmax.f32 %v1046, 0.0
        %v1111 = vmax.f32 %v1047, 0.0
        %v1112 = vmax.f32 %v1048, 0.0
        %v1113 = vmax.f32 %v1049, 0.0
        %v1114 = vmax.f32 %v1050, 0.0
        %v1115 = vmax.f32 %v1051, 0.0
        %v1116 = vmax.f32 %v1052, 0.0
        %v1117 = vmax.f32 %v1053, 0.0
        %v1118 = vmax.f32 %v1054, 0.0
        %v1119 = vmax.f32 %v1055, 0.0
        %v1120 = vmax.f32 %v1056, 0.0
        %v1121 = vmax.f32 %v1057, 0.0
        %v1122 = vmax.f32 %v1058, 0.0
        %v1123 = vmax.f32 %v1059, 0.0
        %v1124 = vmax.f32 %v1060, 0.0
        %v1125 = vmax.f32 %v1061, 0.0
        %v1126 = vmax.f32 %v1062, 0.0
        %v1127 = vmax.f32 %v1063, 0.0
        %v1128 = vmax.f32 %v1064, 0.0
        %v1129 = vmax.f32 %v1065, 0.0
        %v1130 = vmax.f32 %v1066, 0.0
        %v1131 = vmax.f32 %v1067, 0.0
        %v1132 = vmax.f32 %v1068, 0.0
        %v1133 = vmax.f32 %v1069, 0.0
        %v1134 = vmax.f32 %v1070, 0.0
        %v1135 = vmax.f32 %v1071, 0.0
        %v1136 = vmax.f32 %v1072, 0.0
        %v1137 = vmax.f32 %v1073, 0.0
        %v1138 = vmax.f32 %v1074, 0.0
        %v1139 = vmax.f32 %v1075, 0.0
        %v1140 = vmax.f32 %v1076, 0.0
        %v1141 = vmax.f32 %v1077, 0.0
        %v1142 = vmax.f32 %v1078, 0.0
        %v1143 = vmax.f32 %v1079, 0.0
        %v1144 = vmax.f32 %v1080, 0.0
        %v1145 = vmax.f32 %v1081, 0.0
        %v1146 = vmax.f32 %v1082, 0.0
        %v1147 = vmax.f32 %v1083, 0.0
        %v1148 = vmax.f32 %v1084, 0.0
        %v1149 = vmax.f32 %v1085, 0.0
        %v1150 = vmax.f32 %v1086, 0.0
        %v1151 = vmax.f32 %v1087, 0.0
        %v1152 = vld [vmem:[%s3] sm:$0xf]
        %v1153 = vld [vmem:[%s4] sm:$0xf]
        %v1154 = vld [vmem:[%s4 + $0x4] sm:$0xf]
        %v1155 = vld [vmem:[%s4 + $0x8] sm:$0xf]
        %v1156 = vld [vmem:[%s4 + $0xc] sm:$0xf]
        %v1157 = vld [vmem:[%s4 + $0x10] sm:$0xf]
        %v1158 = vld [vmem:[%s4 + $0x14] sm:$0xf]
        %v1159 = vld [vmem:[%s4 + $0x18] sm:$0xf]
        %v1160 = vld [vmem:[%s4 + $0x1c] sm:$0xf]
        %v1161 = vld [vmem:[%s4 + $0x20] sm:$0xf]
        %v1162 = vld [vmem:[%s4 + $0x24] sm:$0xf]
        %v1163 = vld [vmem:[%s4 + $0x28] sm:$0xf]
        %v1164 = vld [vmem:[%s4 + $0x2c] sm:$0xf]
        %v1165 = vld [vmem:[%s4 + $0x30] sm:$0xf]
        %v1166 = vld [vmem:[%s4 + $0x34] sm:$0xf]
        %v1167 = vld [vmem:[%s4 + $0x38] sm:$0xf]
        %v1168 = vld [vmem:[%s4 + $0x3c] sm:$0xf]
        %v1169 = vld [vmem:[%s4 + $0x40] sm:$0xf]
        %v1170 = vld [vmem:[%s4 + $0x44] sm:$0xf]
        %v1171 = vld [vmem:[%s4 + $0x48] sm:$0xf]
        %v1172 = vld [vmem:[%s4 + $0x4c] sm:$0xf]
        %v1173 = vld [vmem:[%s4 + $0x50] sm:$0xf]
        %v1174 = vld [vmem:[%s4 + $0x54] sm:$0xf]
        %v1175 = vld [vmem:[%s4 + $0x58] sm:$0xf]
        %v1176 = vld [vmem:[%s4 + $0x5c] sm:$0xf]
        %v1177 = vld [vmem:[%s4 + $0x60] sm:$0xf]
        %v1178 = vld [vmem:[%s4 + $0x64] sm:$0xf]
        %v1179 = vld [vmem:[%s4 + $0x68] sm:$0xf]
        %v1180 = vld [vmem:[%s4 + $0x6c] sm:$0xf]
        %v1181 = vld [vmem:[%s4 + $0x70] sm:$0xf]
        %v1182 = vld [vmem:[%s4 + $0x74] sm:$0xf]
        %v1183 = vld [vmem:[%s4 + $0x78] sm:$0xf]
        %v1184 = vld [vmem:[%s4 + $0x7c] sm:$0xf]
        %v1185 = vld [vmem:[%s4 + $0x80] sm:$0xf]
        %v1186 = vld [vmem:[%s4 + $0x84] sm:$0xf]
        %v1187 = vld [vmem:[%s4 + $0x88] sm:$0xf]
        %v1188 = vld [vmem:[%s4 + $0x8c] sm:$0xf]
        %v1189 = vld [vmem:[%s4 + $0x90] sm:$0xf]
        %v1190 = vld [vmem:[%s4 + $0x94] sm:$0xf]
        %v1191 = vld [vmem:[%s4 + $0x98] sm:$0xf]
        %v1192 = vld [vmem:[%s4 + $0x9c] sm:$0xf]
        %v1193 = vld [vmem:[%s4 + $0xa0] sm:$0xf]
        %v1194 = vld [vmem:[%s4 + $0xa4] sm:$0xf]
        %v1195 = vld [vmem:[%s4 + $0xa8] sm:$0xf]
        %v1196 = vld [vmem:[%s4 + $0xac] sm:$0xf]
        %v1197 = vld [vmem:[%s4 + $0xb0] sm:$0xf]
        %v1198 = vld [vmem:[%s4 + $0xb4] sm:$0xf]
        %v1199 = vld [vmem:[%s4 + $0xb8] sm:$0xf]
        %v1200 = vld [vmem:[%s4 + $0xbc] sm:$0xf]
        %v1201 = vld [vmem:[%s4 + $0xc0] sm:$0xf]
        %v1202 = vld [vmem:[%s4 + $0xc4] sm:$0xf]
        %v1203 = vld [vmem:[%s4 + $0xc8] sm:$0xf]
        %v1204 = vld [vmem:[%s4 + $0xcc] sm:$0xf]
        %v1205 = vld [vmem:[%s4 + $0xd0] sm:$0xf]
        %v1206 = vld [vmem:[%s4 + $0xd4] sm:$0xf]
        %v1207 = vld [vmem:[%s4 + $0xd8] sm:$0xf]
        %v1208 = vld [vmem:[%s4 + $0xdc] sm:$0xf]
        %v1209 = vld [vmem:[%s4 + $0xe0] sm:$0xf]
        %v1210 = vld [vmem:[%s4 + $0xe4] sm:$0xf]
        %v1211 = vld [vmem:[%s4 + $0xe8] sm:$0xf]
        %v1212 = vld [vmem:[%s4 + $0xec] sm:$0xf]
        %v1213 = vld [vmem:[%s4 + $0xf0] sm:$0xf]
        %v1214 = vld [vmem:[%s4 + $0xf4] sm:$0xf]
        %v1215 = vld [vmem:[%s4 + $0xf8] sm:$0xf]
        %v1216 = vld [vmem:[%s4 + $0xfc] sm:$0xf]
        %s1217 = sld [smem:[#allocation2 + $0x1]]
        %v1218 = vmul.f32 %v1088, %v1088
        %v1219 = vmul.f32 %v1089, %v1089
        %v1220 = vmul.f32 %v1090, %v1090
        %v1221 = vmul.f32 %v1091, %v1091
        %v1222 = vmul.f32 %v1092, %v1092
        %v1223 = vmul.f32 %v1093, %v1093
        %v1224 = vmul.f32 %v1094, %v1094
        %v1225 = vmul.f32 %v1095, %v1095
        %v1226 = vmul.f32 %v1096, %v1096
        %v1227 = vmul.f32 %v1097, %v1097
        %v1228 = vmul.f32 %v1098, %v1098
        %v1229 = vmul.f32 %v1099, %v1099
        %v1230 = vmul.f32 %v1100, %v1100
        %v1231 = vmul.f32 %v1101, %v1101
        %v1232 = vmul.f32 %v1102, %v1102
        %v1233 = vmul.f32 %v1103, %v1103
        %v1234 = vmul.f32 %v1104, %v1104
        %v1235 = vmul.f32 %v1105, %v1105
        %v1236 = vmul.f32 %v1106, %v1106
        %v1237 = vmul.f32 %v1107, %v1107
        %v1238 = vmul.f32 %v1108, %v1108
        %v1239 = vmul.f32 %v1109, %v1109
        %v1240 = vmul.f32 %v1110, %v1110
        %v1241 = vmul.f32 %v1111, %v1111
        %v1242 = vmul.f32 %v1112, %v1112
        %v1243 = vmul.f32 %v1113, %v1113
        %v1244 = vmul.f32 %v1114, %v1114
        %v1245 = vmul.f32 %v1115, %v1115
        %v1246 = vmul.f32 %v1116, %v1116
        %v1247 = vmul.f32 %v1117, %v1117
        %v1248 = vmul.f32 %v1118, %v1118
        %v1249 = vmul.f32 %v1119, %v1119
        %v1250 = vmul.f32 %v1120, %v1120
        %v1251 = vmul.f32 %v1121, %v1121
        %v1252 = vmul.f32 %v1122, %v1122
        %v1253 = vmul.f32 %v1123, %v1123
        %v1254 = vmul.f32 %v1124, %v1124
        %v1255 = vmul.f32 %v1125, %v1125
        %v1256 = vmul.f32 %v1126, %v1126
        %v1257 = vmul.f32 %v1127, %v1127
        %v1258 = vmul.f32 %v1128, %v1128
        %v1259 = vmul.f32 %v1129, %v1129
        %v1260 = vmul.f32 %v1130, %v1130
        %v1261 = vmul.f32 %v1131, %v1131
        %v1262 = vmul.f32 %v1132, %v1132
        %v1263 = vmul.f32 %v1133, %v1133
        %v1264 = vmul.f32 %v1134, %v1134
        %v1265 = vmul.f32 %v1135, %v1135
        %v1266 = vmul.f32 %v1136, %v1136
        %v1267 = vmul.f32 %v1137, %v1137
        %v1268 = vmul.f32 %v1138, %v1138
        %v1269 = vmul.f32 %v1139, %v1139
        %v1270 = vmul.f32 %v1140, %v1140
        %v1271 = vmul.f32 %v1141, %v1141
        %v1272 = vmul.f32 %v1142, %v1142
        %v1273 = vmul.f32 %v1143, %v1143
        %v1274 = vmul.f32 %v1144, %v1144
        %v1275 = vmul.f32 %v1145, %v1145
        %v1276 = vmul.f32 %v1146, %v1146
        %v1277 = vmul.f32 %v1147, %v1147
        %v1278 = vmul.f32 %v1148, %v1148
        %v1279 = vmul.f32 %v1149, %v1149
        %v1280 = vmul.f32 %v1150, %v1150
        %v1281 = vmul.f32 %v1151, %v1151
        %v1282 = vadd.f32 %v1218, %v1219
        %v1283 = vadd.f32 %v1282, %v1220
        %v1284 = vadd.f32 %v1283, %v1221
        %1285 = vadd.xlane.f32.xlu0 %v1284
        %v1286 = vpop.xlane.xlu0 %1285
        %v1287 = vadd.f32 %v1222, %v1223
        %v1288 = vadd.f32 %v1287, %v1224
        %v1289 = vadd.f32 %v1288, %v1225
        %1290 = vadd.xlane.f32.xlu0 %v1289
        %v1291 = vpop.xlane.xlu0 %1290
        %v1292 = vadd.f32 %v1226, %v1227
        %v1293 = vadd.f32 %v1292, %v1228
        %v1294 = vadd.f32 %v1293, %v1229
        %1295 = vadd.xlane.f32.xlu0 %v1294
        %v1296 = vpop.xlane.xlu0 %1295
        %v1297 = vadd.f32 %v1230, %v1231
        %v1298 = vadd.f32 %v1297, %v1232
        %v1299 = vadd.f32 %v1298, %v1233
        %1300 = vadd.xlane.f32.xlu0 %v1299
        %v1301 = vpop.xlane.xlu0 %1300
        %v1302 = vadd.f32 %v1234, %v1235
        %v1303 = vadd.f32 %v1302, %v1236
        %v1304 = vadd.f32 %v1303, %v1237
        %1305 = vadd.xlane.f32.xlu0 %v1304
        %v1306 = vpop.xlane.xlu0 %1305
        %v1307 = vadd.f32 %v1238, %v1239
        %v1308 = vadd.f32 %v1307, %v1240
        %v1309 = vadd.f32 %v1308, %v1241
        %1310 = vadd.xlane.f32.xlu0 %v1309
        %v1311 = vpop.xlane.xlu0 %1310
        %v1312 = vadd.f32 %v1242, %v1243
        %v1313 = vadd.f32 %v1312, %v1244
        %v1314 = vadd.f32 %v1313, %v1245
        %1315 = vadd.xlane.f32.xlu0 %v1314
        %v1316 = vpop.xlane.xlu0 %1315
        %v1317 = vadd.f32 %v1246, %v1247
        %v1318 = vadd.f32 %v1317, %v1248
        %v1319 = vadd.f32 %v1318, %v1249
        %1320 = vadd.xlane.f32.xlu0 %v1319
        %v1321 = vpop.xlane.xlu0 %1320
        %v1322 = vadd.f32 %v1250, %v1251
        %v1323 = vadd.f32 %v1322, %v1252
        %v1324 = vadd.f32 %v1323, %v1253
        %1325 = vadd.xlane.f32.xlu0 %v1324
        %v1326 = vpop.xlane.xlu0 %1325
        %v1327 = vadd.f32 %v1254, %v1255
        %v1328 = vadd.f32 %v1327, %v1256
        %v1329 = vadd.f32 %v1328, %v1257
        %1330 = vadd.xlane.f32.xlu0 %v1329
        %v1331 = vpop.xlane.xlu0 %1330
        %v1332 = vadd.f32 %v1258, %v1259
        %v1333 = vadd.f32 %v1332, %v1260
        %v1334 = vadd.f32 %v1333, %v1261
        %1335 = vadd.xlane.f32.xlu0 %v1334
        %v1336 = vpop.xlane.xlu0 %1335
        %v1337 = vadd.f32 %v1262, %v1263
        %v1338 = vadd.f32 %v1337, %v1264
        %v1339 = vadd.f32 %v1338, %v1265
        %1340 = vadd.xlane.f32.xlu0 %v1339
        %v1341 = vpop.xlane.xlu0 %1340
        %v1342 = vadd.f32 %v1266, %v1267
        %v1343 = vadd.f32 %v1342, %v1268
        %v1344 = vadd.f32 %v1343, %v1269
        %1345 = vadd.xlane.f32.xlu0 %v1344
        %v1346 = vpop.xlane.xlu0 %1345
        %v1347 = vadd.f32 %v1270, %v1271
        %v1348 = vadd.f32 %v1347, %v1272
        %v1349 = vadd.f32 %v1348, %v1273
        %1350 = vadd.xlane.f32.xlu0 %v1349
        %v1351 = vpop.xlane.xlu0 %1350
        %v1352 = vadd.f32 %v1274, %v1275
        %v1353 = vadd.f32 %v1352, %v1276
        %v1354 = vadd.f32 %v1353, %v1277
        %1355 = vadd.xlane.f32.xlu0 %v1354
        %v1356 = vpop.xlane.xlu0 %1355
        %v1357 = vadd.f32 %v1278, %v1279
        %v1358 = vadd.f32 %v1357, %v1280
        %v1359 = vadd.f32 %v1358, %v1281
        %1360 = vadd.xlane.f32.xlu0 %v1359
        %v1361 = vpop.xlane.xlu0 %1360
        %v1362 = vrcp.pop 512.0
        %v1363 = vmul.f32 %v1286, %v1362
        %v1364 = vmul.f32 %v1291, %v1362
        %v1365 = vmul.f32 %v1296, %v1362
        %v1366 = vmul.f32 %v1301, %v1362
        %v1367 = vmul.f32 %v1306, %v1362
        %v1368 = vmul.f32 %v1311, %v1362
        %v1369 = vmul.f32 %v1316, %v1362
        %v1370 = vmul.f32 %v1321, %v1362
        %v1371 = vmul.f32 %v1326, %v1362
        %v1372 = vmul.f32 %v1331, %v1362
        %v1373 = vmul.f32 %v1336, %v1362
        %v1374 = vmul.f32 %v1341, %v1362
        %v1375 = vmul.f32 %v1346, %v1362
        %v1376 = vmul.f32 %v1351, %v1362
        %v1377 = vmul.f32 %v1356, %v1362
        %v1378 = vmul.f32 %v1361, %v1362
        %v1379 = vadd.f32 %v1363, 1e-06
        %v1380 = vadd.f32 %v1364, 1e-06
        %v1381 = vadd.f32 %v1365, 1e-06
        %v1382 = vadd.f32 %v1366, 1e-06
        %v1383 = vadd.f32 %v1367, 1e-06
        %v1384 = vadd.f32 %v1368, 1e-06
        %v1385 = vadd.f32 %v1369, 1e-06
        %v1386 = vadd.f32 %v1370, 1e-06
        %v1387 = vadd.f32 %v1371, 1e-06
        %v1388 = vadd.f32 %v1372, 1e-06
        %v1389 = vadd.f32 %v1373, 1e-06
        %v1390 = vadd.f32 %v1374, 1e-06
        %v1391 = vadd.f32 %v1375, 1e-06
        %v1392 = vadd.f32 %v1376, 1e-06
        %v1393 = vadd.f32 %v1377, 1e-06
        %v1394 = vadd.f32 %v1378, 1e-06
        %v1395 = vrsqrt.pop %v1379
        %v1396 = vrsqrt.pop %v1380
        %v1397 = vrsqrt.pop %v1381
        %v1398 = vrsqrt.pop %v1382
        %v1399 = vrsqrt.pop %v1383
        %v1400 = vrsqrt.pop %v1384
        %v1401 = vrsqrt.pop %v1385
        %v1402 = vrsqrt.pop %v1386
        %v1403 = vrsqrt.pop %v1387
        %v1404 = vrsqrt.pop %v1388
        %v1405 = vrsqrt.pop %v1389
        %v1406 = vrsqrt.pop %v1390
        %v1407 = vrsqrt.pop %v1391
        %v1408 = vrsqrt.pop %v1392
        %v1409 = vrsqrt.pop %v1393
        %v1410 = vrsqrt.pop %v1394
        %v1411 = vmul.f32 %v1088, %v1395
        %v1412 = vmul.f32 %v1089, %v1395
        %v1413 = vmul.f32 %v1090, %v1395
        %v1414 = vmul.f32 %v1091, %v1395
        %v1415 = vmul.f32 %v1092, %v1396
        %v1416 = vmul.f32 %v1093, %v1396
        %v1417 = vmul.f32 %v1094, %v1396
        %v1418 = vmul.f32 %v1095, %v1396
        %v1419 = vmul.f32 %v1096, %v1397
        %v1420 = vmul.f32 %v1097, %v1397
        %v1421 = vmul.f32 %v1098, %v1397
        %v1422 = vmul.f32 %v1099, %v1397
        %v1423 = vmul.f32 %v1100, %v1398
        %v1424 = vmul.f32 %v1101, %v1398
        %v1425 = vmul.f32 %v1102, %v1398
        %v1426 = vmul.f32 %v1103, %v1398
        %v1427 = vmul.f32 %v1104, %v1399
        %v1428 = vmul.f32 %v1105, %v1399
        %v1429 = vmul.f32 %v1106, %v1399
        %v1430 = vmul.f32 %v1107, %v1399
        %v1431 = vmul.f32 %v1108, %v1400
        %v1432 = vmul.f32 %v1109, %v1400
        %v1433 = vmul.f32 %v1110, %v1400
        %v1434 = vmul.f32 %v1111, %v1400
        %v1435 = vmul.f32 %v1112, %v1401
        %v1436 = vmul.f32 %v1113, %v1401
        %v1437 = vmul.f32 %v1114, %v1401
        %v1438 = vmul.f32 %v1115, %v1401
        %v1439 = vmul.f32 %v1116, %v1402
        %v1440 = vmul.f32 %v1117, %v1402
        %v1441 = vmul.f32 %v1118, %v1402
        %v1442 = vmul.f32 %v1119, %v1402
        %v1443 = vmul.f32 %v1120, %v1403
        %v1444 = vmul.f32 %v1121, %v1403
        %v1445 = vmul.f32 %v1122, %v1403
        %v1446 = vmul.f32 %v1123, %v1403
        %v1447 = vmul.f32 %v1124, %v1404
        %v1448 = vmul.f32 %v1125, %v1404
        %v1449 = vmul.f32 %v1126, %v1404
        %v1450 = vmul.f32 %v1127, %v1404
        %v1451 = vmul.f32 %v1128, %v1405
        %v1452 = vmul.f32 %v1129, %v1405
        %v1453 = vmul.f32 %v1130, %v1405
        %v1454 = vmul.f32 %v1131, %v1405
        %v1455 = vmul.f32 %v1132, %v1406
        %v1456 = vmul.f32 %v1133, %v1406
        %v1457 = vmul.f32 %v1134, %v1406
        %v1458 = vmul.f32 %v1135, %v1406
        %v1459 = vmul.f32 %v1136, %v1407
        %v1460 = vmul.f32 %v1137, %v1407
        %v1461 = vmul.f32 %v1138, %v1407
        %v1462 = vmul.f32 %v1139, %v1407
        %v1463 = vmul.f32 %v1140, %v1408
        %v1464 = vmul.f32 %v1141, %v1408
        %v1465 = vmul.f32 %v1142, %v1408
        %v1466 = vmul.f32 %v1143, %v1408
        %v1467 = vmul.f32 %v1144, %v1409
        %v1468 = vmul.f32 %v1145, %v1409
        %v1469 = vmul.f32 %v1146, %v1409
        %v1470 = vmul.f32 %v1147, %v1409
        %v1471 = vmul.f32 %v1148, %v1410
        %v1472 = vmul.f32 %v1149, %v1410
        %v1473 = vmul.f32 %v1150, %v1410
        %v1474 = vmul.f32 %v1151, %v1410
        %v1476 = vlaneseq
        %v1477 = vshrl.u32 %v1476, 7
        %v1478 = vsub.s32 0, %v1477
        %v1479 = vrot.slane %v1152, %v1478
        %v1480 = vlaneseq
        %v1481 = vshrl.u32 %v1480, 7
        %v1482 = vsub.s32 1, %v1481
        %v1483 = vrot.slane %v1152, %v1482
        %v1484 = vlaneseq
        %v1485 = vshrl.u32 %v1484, 7
        %v1486 = vsub.s32 2, %v1485
        %v1487 = vrot.slane %v1152, %v1486
        %v1488 = vlaneseq
        %v1489 = vshrl.u32 %v1488, 7
        %v1490 = vsub.s32 3, %v1489
        %v1491 = vrot.slane %v1152, %v1490
        %v1496 = vmul.f32 %v1411, %v1479
        %v1497 = vmul.f32 %v1412, %v1483
        %v1498 = vmul.f32 %v1413, %v1487
        %v1499 = vmul.f32 %v1414, %v1491
        %v1500 = vmul.f32 %v1415, %v1479
        %v1501 = vmul.f32 %v1416, %v1483
        %v1502 = vmul.f32 %v1417, %v1487
        %v1503 = vmul.f32 %v1418, %v1491
        %v1504 = vmul.f32 %v1419, %v1479
        %v1505 = vmul.f32 %v1420, %v1483
        %v1506 = vmul.f32 %v1421, %v1487
        %v1507 = vmul.f32 %v1422, %v1491
        %v1508 = vmul.f32 %v1423, %v1479
        %v1509 = vmul.f32 %v1424, %v1483
        %v1510 = vmul.f32 %v1425, %v1487
        %v1511 = vmul.f32 %v1426, %v1491
        %v1512 = vmul.f32 %v1427, %v1479
        %v1513 = vmul.f32 %v1428, %v1483
        %v1514 = vmul.f32 %v1429, %v1487
        %v1515 = vmul.f32 %v1430, %v1491
        %v1516 = vmul.f32 %v1431, %v1479
        %v1517 = vmul.f32 %v1432, %v1483
        %v1518 = vmul.f32 %v1433, %v1487
        %v1519 = vmul.f32 %v1434, %v1491
        %v1520 = vmul.f32 %v1435, %v1479
        %v1521 = vmul.f32 %v1436, %v1483
        %v1522 = vmul.f32 %v1437, %v1487
        %v1523 = vmul.f32 %v1438, %v1491
        %v1524 = vmul.f32 %v1439, %v1479
        %v1525 = vmul.f32 %v1440, %v1483
        %v1526 = vmul.f32 %v1441, %v1487
        %v1527 = vmul.f32 %v1442, %v1491
        %v1528 = vmul.f32 %v1443, %v1479
        %v1529 = vmul.f32 %v1444, %v1483
        %v1530 = vmul.f32 %v1445, %v1487
        %v1531 = vmul.f32 %v1446, %v1491
        %v1532 = vmul.f32 %v1447, %v1479
        %v1533 = vmul.f32 %v1448, %v1483
        %v1534 = vmul.f32 %v1449, %v1487
        %v1535 = vmul.f32 %v1450, %v1491
        %v1536 = vmul.f32 %v1451, %v1479
        %v1537 = vmul.f32 %v1452, %v1483
        %v1538 = vmul.f32 %v1453, %v1487
        %v1539 = vmul.f32 %v1454, %v1491
        %v1540 = vmul.f32 %v1455, %v1479
        %v1541 = vmul.f32 %v1456, %v1483
        %v1542 = vmul.f32 %v1457, %v1487
        %v1543 = vmul.f32 %v1458, %v1491
        %v1544 = vmul.f32 %v1459, %v1479
        %v1545 = vmul.f32 %v1460, %v1483
        %v1546 = vmul.f32 %v1461, %v1487
        %v1547 = vmul.f32 %v1462, %v1491
        %v1548 = vmul.f32 %v1463, %v1479
        %v1549 = vmul.f32 %v1464, %v1483
        %v1550 = vmul.f32 %v1465, %v1487
        %v1551 = vmul.f32 %v1466, %v1491
        %v1552 = vmul.f32 %v1467, %v1479
        %v1553 = vmul.f32 %v1468, %v1483
        %v1554 = vmul.f32 %v1469, %v1487
        %v1555 = vmul.f32 %v1470, %v1491
        %v1556 = vmul.f32 %v1471, %v1479
        %v1557 = vmul.f32 %v1472, %v1483
        %v1558 = vmul.f32 %v1473, %v1487
        %v1559 = vmul.f32 %v1474, %v1491
        %v1560 = vand.u32 2147483647, %v1496
        %v1561 = vand.u32 2147483647, %v1497
        %v1562 = vand.u32 2147483647, %v1498
        %v1563 = vand.u32 2147483647, %v1499
        %v1564 = vand.u32 2147483647, %v1500
        %v1565 = vand.u32 2147483647, %v1501
        %v1566 = vand.u32 2147483647, %v1502
        %v1567 = vand.u32 2147483647, %v1503
        %v1568 = vand.u32 2147483647, %v1504
        %v1569 = vand.u32 2147483647, %v1505
        %v1570 = vand.u32 2147483647, %v1506
        %v1571 = vand.u32 2147483647, %v1507
        %v1572 = vand.u32 2147483647, %v1508
        %v1573 = vand.u32 2147483647, %v1509
        %v1574 = vand.u32 2147483647, %v1510
        %v1575 = vand.u32 2147483647, %v1511
        %v1576 = vand.u32 2147483647, %v1512
        %v1577 = vand.u32 2147483647, %v1513
        %v1578 = vand.u32 2147483647, %v1514
        %v1579 = vand.u32 2147483647, %v1515
        %v1580 = vand.u32 2147483647, %v1516
        %v1581 = vand.u32 2147483647, %v1517
        %v1582 = vand.u32 2147483647, %v1518
        %v1583 = vand.u32 2147483647, %v1519
        %v1584 = vand.u32 2147483647, %v1520
        %v1585 = vand.u32 2147483647, %v1521
        %v1586 = vand.u32 2147483647, %v1522
        %v1587 = vand.u32 2147483647, %v1523
        %v1588 = vand.u32 2147483647, %v1524
        %v1589 = vand.u32 2147483647, %v1525
        %v1590 = vand.u32 2147483647, %v1526
        %v1591 = vand.u32 2147483647, %v1527
        %v1592 = vand.u32 2147483647, %v1528
        %v1593 = vand.u32 2147483647, %v1529
        %v1594 = vand.u32 2147483647, %v1530
        %v1595 = vand.u32 2147483647, %v1531
        %v1596 = vand.u32 2147483647, %v1532
        %v1597 = vand.u32 2147483647, %v1533
        %v1598 = vand.u32 2147483647, %v1534
        %v1599 = vand.u32 2147483647, %v1535
        %v1600 = vand.u32 2147483647, %v1536
        %v1601 = vand.u32 2147483647, %v1537
        %v1602 = vand.u32 2147483647, %v1538
        %v1603 = vand.u32 2147483647, %v1539
        %v1604 = vand.u32 2147483647, %v1540
        %v1605 = vand.u32 2147483647, %v1541
        %v1606 = vand.u32 2147483647, %v1542
        %v1607 = vand.u32 2147483647, %v1543
        %v1608 = vand.u32 2147483647, %v1544
        %v1609 = vand.u32 2147483647, %v1545
        %v1610 = vand.u32 2147483647, %v1546
        %v1611 = vand.u32 2147483647, %v1547
        %v1612 = vand.u32 2147483647, %v1548
        %v1613 = vand.u32 2147483647, %v1549
        %v1614 = vand.u32 2147483647, %v1550
        %v1615 = vand.u32 2147483647, %v1551
        %v1616 = vand.u32 2147483647, %v1552
        %v1617 = vand.u32 2147483647, %v1553
        %v1618 = vand.u32 2147483647, %v1554
        %v1619 = vand.u32 2147483647, %v1555
        %v1620 = vand.u32 2147483647, %v1556
        %v1621 = vand.u32 2147483647, %v1557
        %v1622 = vand.u32 2147483647, %v1558
        %v1623 = vand.u32 2147483647, %v1559
        %v1624 = vmax.f32 %v1560, %v1561
        %v1625 = vmax.f32 %v1624, %v1562
        %v1626 = vmax.f32 %v1625, %v1563
        %1627 = vmax.xlane.f32.xlu0 %v1626
        %v1628 = vpop.xlane.xlu0 %1627
        %v1629 = vmax.f32 %v1564, %v1565
        %v1630 = vmax.f32 %v1629, %v1566
        %v1631 = vmax.f32 %v1630, %v1567
        %1632 = vmax.xlane.f32.xlu0 %v1631
        %v1633 = vpop.xlane.xlu0 %1632
        %v1634 = vmax.f32 %v1568, %v1569
        %v1635 = vmax.f32 %v1634, %v1570
        %v1636 = vmax.f32 %v1635, %v1571
        %1637 = vmax.xlane.f32.xlu0 %v1636
        %v1638 = vpop.xlane.xlu0 %1637
        %v1639 = vmax.f32 %v1572, %v1573
        %v1640 = vmax.f32 %v1639, %v1574
        %v1641 = vmax.f32 %v1640, %v1575
        %1642 = vmax.xlane.f32.xlu0 %v1641
        %v1643 = vpop.xlane.xlu0 %1642
        %v1644 = vmax.f32 %v1576, %v1577
        %v1645 = vmax.f32 %v1644, %v1578
        %v1646 = vmax.f32 %v1645, %v1579
        %1647 = vmax.xlane.f32.xlu0 %v1646
        %v1648 = vpop.xlane.xlu0 %1647
        %v1649 = vmax.f32 %v1580, %v1581
        %v1650 = vmax.f32 %v1649, %v1582
        %v1651 = vmax.f32 %v1650, %v1583
        %1652 = vmax.xlane.f32.xlu0 %v1651
        %v1653 = vpop.xlane.xlu0 %1652
        %v1654 = vmax.f32 %v1584, %v1585
        %v1655 = vmax.f32 %v1654, %v1586
        %v1656 = vmax.f32 %v1655, %v1587
        %1657 = vmax.xlane.f32.xlu0 %v1656
        %v1658 = vpop.xlane.xlu0 %1657
        %v1659 = vmax.f32 %v1588, %v1589
        %v1660 = vmax.f32 %v1659, %v1590
        %v1661 = vmax.f32 %v1660, %v1591
        %1662 = vmax.xlane.f32.xlu0 %v1661
        %v1663 = vpop.xlane.xlu0 %1662
        %v1664 = vmax.f32 %v1592, %v1593
        %v1665 = vmax.f32 %v1664, %v1594
        %v1666 = vmax.f32 %v1665, %v1595
        %1667 = vmax.xlane.f32.xlu0 %v1666
        %v1668 = vpop.xlane.xlu0 %1667
        %v1669 = vmax.f32 %v1596, %v1597
        %v1670 = vmax.f32 %v1669, %v1598
        %v1671 = vmax.f32 %v1670, %v1599
        %1672 = vmax.xlane.f32.xlu0 %v1671
        %v1673 = vpop.xlane.xlu0 %1672
        %v1674 = vmax.f32 %v1600, %v1601
        %v1675 = vmax.f32 %v1674, %v1602
        %v1676 = vmax.f32 %v1675, %v1603
        %1677 = vmax.xlane.f32.xlu0 %v1676
        %v1678 = vpop.xlane.xlu0 %1677
        %v1679 = vmax.f32 %v1604, %v1605
        %v1680 = vmax.f32 %v1679, %v1606
        %v1681 = vmax.f32 %v1680, %v1607
        %1682 = vmax.xlane.f32.xlu0 %v1681
        %v1683 = vpop.xlane.xlu0 %1682
        %v1684 = vmax.f32 %v1608, %v1609
        %v1685 = vmax.f32 %v1684, %v1610
        %v1686 = vmax.f32 %v1685, %v1611
        %1687 = vmax.xlane.f32.xlu0 %v1686
        %v1688 = vpop.xlane.xlu0 %1687
        %v1689 = vmax.f32 %v1612, %v1613
        %v1690 = vmax.f32 %v1689, %v1614
        %v1691 = vmax.f32 %v1690, %v1615
        %1692 = vmax.xlane.f32.xlu0 %v1691
        %v1693 = vpop.xlane.xlu0 %1692
        %v1694 = vmax.f32 %v1616, %v1617
        %v1695 = vmax.f32 %v1694, %v1618
        %v1696 = vmax.f32 %v1695, %v1619
        %1697 = vmax.xlane.f32.xlu0 %v1696
        %v1698 = vpop.xlane.xlu0 %1697
        %v1699 = vmax.f32 %v1620, %v1621
        %v1700 = vmax.f32 %v1699, %v1622
        %v1701 = vmax.f32 %v1700, %v1623
        %1702 = vmax.xlane.f32.xlu0 %v1701
        %v1703 = vpop.xlane.xlu0 %1702
        %v1704 = vmax.f32 %v1628, 1e-05
        %v1705 = vmax.f32 %v1633, 1e-05
        %v1706 = vmax.f32 %v1638, 1e-05
        %v1707 = vmax.f32 %v1643, 1e-05
        %v1708 = vmax.f32 %v1648, 1e-05
        %v1709 = vmax.f32 %v1653, 1e-05
        %v1710 = vmax.f32 %v1658, 1e-05
        %v1711 = vmax.f32 %v1663, 1e-05
        %v1712 = vmax.f32 %v1668, 1e-05
        %v1713 = vmax.f32 %v1673, 1e-05
        %v1714 = vmax.f32 %v1678, 1e-05
        %v1715 = vmax.f32 %v1683, 1e-05
        %v1716 = vmax.f32 %v1688, 1e-05
        %v1717 = vmax.f32 %v1693, 1e-05
        %v1718 = vmax.f32 %v1698, 1e-05
        %v1719 = vmax.f32 %v1703, 1e-05
        %v1720 = vrcp.pop %v1704
        %v1721 = vmul.f32 127.0, %v1720
        %v1722 = vrcp.pop %v1705
        %v1723 = vmul.f32 127.0, %v1722
        %v1724 = vrcp.pop %v1706
        %v1725 = vmul.f32 127.0, %v1724
        %v1726 = vrcp.pop %v1707
        %v1727 = vmul.f32 127.0, %v1726
        %v1728 = vrcp.pop %v1708
        %v1729 = vmul.f32 127.0, %v1728
        %v1730 = vrcp.pop %v1709
        %v1731 = vmul.f32 127.0, %v1730
        %v1732 = vrcp.pop %v1710
        %v1733 = vmul.f32 127.0, %v1732
        %v1734 = vrcp.pop %v1711
        %v1735 = vmul.f32 127.0, %v1734
        %v1736 = vrcp.pop %v1712
        %v1737 = vmul.f32 127.0, %v1736
        %v1738 = vrcp.pop %v1713
        %v1739 = vmul.f32 127.0, %v1738
        %v1740 = vrcp.pop %v1714
        %v1741 = vmul.f32 127.0, %v1740
        %v1742 = vrcp.pop %v1715
        %v1743 = vmul.f32 127.0, %v1742
        %v1744 = vrcp.pop %v1716
        %v1745 = vmul.f32 127.0, %v1744
        %v1746 = vrcp.pop %v1717
        %v1747 = vmul.f32 127.0, %v1746
        %v1748 = vrcp.pop %v1718
        %v1749 = vmul.f32 127.0, %v1748
        %v1750 = vrcp.pop %v1719
        %v1751 = vmul.f32 127.0, %v1750
        %v1752 = vmul.f32 %v1496, %v1721
        %v1753 = vmul.f32 %v1497, %v1721
        %v1754 = vmul.f32 %v1498, %v1721
        %v1755 = vmul.f32 %v1499, %v1721
        %v1756 = vmul.f32 %v1500, %v1723
        %v1757 = vmul.f32 %v1501, %v1723
        %v1758 = vmul.f32 %v1502, %v1723
        %v1759 = vmul.f32 %v1503, %v1723
        %v1760 = vmul.f32 %v1504, %v1725
        %v1761 = vmul.f32 %v1505, %v1725
        %v1762 = vmul.f32 %v1506, %v1725
        %v1763 = vmul.f32 %v1507, %v1725
        %v1764 = vmul.f32 %v1508, %v1727
        %v1765 = vmul.f32 %v1509, %v1727
        %v1766 = vmul.f32 %v1510, %v1727
        %v1767 = vmul.f32 %v1511, %v1727
        %v1768 = vmul.f32 %v1512, %v1729
        %v1769 = vmul.f32 %v1513, %v1729
        %v1770 = vmul.f32 %v1514, %v1729
        %v1771 = vmul.f32 %v1515, %v1729
        %v1772 = vmul.f32 %v1516, %v1731
        %v1773 = vmul.f32 %v1517, %v1731
        %v1774 = vmul.f32 %v1518, %v1731
        %v1775 = vmul.f32 %v1519, %v1731
        %v1776 = vmul.f32 %v1520, %v1733
        %v1777 = vmul.f32 %v1521, %v1733
        %v1778 = vmul.f32 %v1522, %v1733
        %v1779 = vmul.f32 %v1523, %v1733
        %v1780 = vmul.f32 %v1524, %v1735
        %v1781 = vmul.f32 %v1525, %v1735
        %v1782 = vmul.f32 %v1526, %v1735
        %v1783 = vmul.f32 %v1527, %v1735
        %v1784 = vmul.f32 %v1528, %v1737
        %v1785 = vmul.f32 %v1529, %v1737
        %v1786 = vmul.f32 %v1530, %v1737
        %v1787 = vmul.f32 %v1531, %v1737
        %v1788 = vmul.f32 %v1532, %v1739
        %v1789 = vmul.f32 %v1533, %v1739
        %v1790 = vmul.f32 %v1534, %v1739
        %v1791 = vmul.f32 %v1535, %v1739
        %v1792 = vmul.f32 %v1536, %v1741
        %v1793 = vmul.f32 %v1537, %v1741
        %v1794 = vmul.f32 %v1538, %v1741
        %v1795 = vmul.f32 %v1539, %v1741
        %v1796 = vmul.f32 %v1540, %v1743
        %v1797 = vmul.f32 %v1541, %v1743
        %v1798 = vmul.f32 %v1542, %v1743
        %v1799 = vmul.f32 %v1543, %v1743
        %v1800 = vmul.f32 %v1544, %v1745
        %v1801 = vmul.f32 %v1545, %v1745
        %v1802 = vmul.f32 %v1546, %v1745
        %v1803 = vmul.f32 %v1547, %v1745
        %v1804 = vmul.f32 %v1548, %v1747
        %v1805 = vmul.f32 %v1549, %v1747
        %v1806 = vmul.f32 %v1550, %v1747
        %v1807 = vmul.f32 %v1551, %v1747
        %v1808 = vmul.f32 %v1552, %v1749
        %v1809 = vmul.f32 %v1553, %v1749
        %v1810 = vmul.f32 %v1554, %v1749
        %v1811 = vmul.f32 %v1555, %v1749
        %v1812 = vmul.f32 %v1556, %v1751
        %v1813 = vmul.f32 %v1557, %v1751
        %v1814 = vmul.f32 %v1558, %v1751
        %v1815 = vmul.f32 %v1559, %v1751
        %v1816 = vround.ne.pseudo %v1752
        %v1817 = vround.ne.pseudo %v1753
        %v1818 = vround.ne.pseudo %v1754
        %v1819 = vround.ne.pseudo %v1755
        %v1820 = vround.ne.pseudo %v1756
        %v1821 = vround.ne.pseudo %v1757
        %v1822 = vround.ne.pseudo %v1758
        %v1823 = vround.ne.pseudo %v1759
        %v1824 = vround.ne.pseudo %v1760
        %v1825 = vround.ne.pseudo %v1761
        %v1826 = vround.ne.pseudo %v1762
        %v1827 = vround.ne.pseudo %v1763
        %v1828 = vround.ne.pseudo %v1764
        %v1829 = vround.ne.pseudo %v1765
        %v1830 = vround.ne.pseudo %v1766
        %v1831 = vround.ne.pseudo %v1767
        %v1832 = vround.ne.pseudo %v1768
        %v1833 = vround.ne.pseudo %v1769
        %v1834 = vround.ne.pseudo %v1770
        %v1835 = vround.ne.pseudo %v1771
        %v1836 = vround.ne.pseudo %v1772
        %v1837 = vround.ne.pseudo %v1773
        %v1838 = vround.ne.pseudo %v1774
        %v1839 = vround.ne.pseudo %v1775
        %v1840 = vround.ne.pseudo %v1776
        %v1841 = vround.ne.pseudo %v1777
        %v1842 = vround.ne.pseudo %v1778
        %v1843 = vround.ne.pseudo %v1779
        %v1844 = vround.ne.pseudo %v1780
        %v1845 = vround.ne.pseudo %v1781
        %v1846 = vround.ne.pseudo %v1782
        %v1847 = vround.ne.pseudo %v1783
        %v1848 = vround.ne.pseudo %v1784
        %v1849 = vround.ne.pseudo %v1785
        %v1850 = vround.ne.pseudo %v1786
        %v1851 = vround.ne.pseudo %v1787
        %v1852 = vround.ne.pseudo %v1788
        %v1853 = vround.ne.pseudo %v1789
        %v1854 = vround.ne.pseudo %v1790
        %v1855 = vround.ne.pseudo %v1791
        %v1856 = vround.ne.pseudo %v1792
        %v1857 = vround.ne.pseudo %v1793
        %v1858 = vround.ne.pseudo %v1794
        %v1859 = vround.ne.pseudo %v1795
        %v1860 = vround.ne.pseudo %v1796
        %v1861 = vround.ne.pseudo %v1797
        %v1862 = vround.ne.pseudo %v1798
        %v1863 = vround.ne.pseudo %v1799
        %v1864 = vround.ne.pseudo %v1800
        %v1865 = vround.ne.pseudo %v1801
        %v1866 = vround.ne.pseudo %v1802
        %v1867 = vround.ne.pseudo %v1803
        %v1868 = vround.ne.pseudo %v1804
        %v1869 = vround.ne.pseudo %v1805
        %v1870 = vround.ne.pseudo %v1806
        %v1871 = vround.ne.pseudo %v1807
        %v1872 = vround.ne.pseudo %v1808
        %v1873 = vround.ne.pseudo %v1809
        %v1874 = vround.ne.pseudo %v1810
        %v1875 = vround.ne.pseudo %v1811
        %v1876 = vround.ne.pseudo %v1812
        %v1877 = vround.ne.pseudo %v1813
        %v1878 = vround.ne.pseudo %v1814
        %v1879 = vround.ne.pseudo %v1815
        %v1880 = vmax.f32 %v1816, -128.0
        %v1881 = vmax.f32 %v1817, -128.0
        %v1882 = vmax.f32 %v1818, -128.0
        %v1883 = vmax.f32 %v1819, -128.0
        %v1884 = vmax.f32 %v1820, -128.0
        %v1885 = vmax.f32 %v1821, -128.0
        %v1886 = vmax.f32 %v1822, -128.0
        %v1887 = vmax.f32 %v1823, -128.0
        %v1888 = vmax.f32 %v1824, -128.0
        %v1889 = vmax.f32 %v1825, -128.0
        %v1890 = vmax.f32 %v1826, -128.0
        %v1891 = vmax.f32 %v1827, -128.0
        %v1892 = vmax.f32 %v1828, -128.0
        %v1893 = vmax.f32 %v1829, -128.0
        %v1894 = vmax.f32 %v1830, -128.0
        %v1895 = vmax.f32 %v1831, -128.0
        %v1896 = vmax.f32 %v1832, -128.0
        %v1897 = vmax.f32 %v1833, -128.0
        %v1898 = vmax.f32 %v1834, -128.0
        %v1899 = vmax.f32 %v1835, -128.0
        %v1900 = vmax.f32 %v1836, -128.0
        %v1901 = vmax.f32 %v1837, -128.0
        %v1902 = vmax.f32 %v1838, -128.0
        %v1903 = vmax.f32 %v1839, -128.0
        %v1904 = vmax.f32 %v1840, -128.0
        %v1905 = vmax.f32 %v1841, -128.0
        %v1906 = vmax.f32 %v1842, -128.0
        %v1907 = vmax.f32 %v1843, -128.0
        %v1908 = vmax.f32 %v1844, -128.0
        %v1909 = vmax.f32 %v1845, -128.0
        %v1910 = vmax.f32 %v1846, -128.0
        %v1911 = vmax.f32 %v1847, -128.0
        %v1912 = vmax.f32 %v1848, -128.0
        %v1913 = vmax.f32 %v1849, -128.0
        %v1914 = vmax.f32 %v1850, -128.0
        %v1915 = vmax.f32 %v1851, -128.0
        %v1916 = vmax.f32 %v1852, -128.0
        %v1917 = vmax.f32 %v1853, -128.0
        %v1918 = vmax.f32 %v1854, -128.0
        %v1919 = vmax.f32 %v1855, -128.0
        %v1920 = vmax.f32 %v1856, -128.0
        %v1921 = vmax.f32 %v1857, -128.0
        %v1922 = vmax.f32 %v1858, -128.0
        %v1923 = vmax.f32 %v1859, -128.0
        %v1924 = vmax.f32 %v1860, -128.0
        %v1925 = vmax.f32 %v1861, -128.0
        %v1926 = vmax.f32 %v1862, -128.0
        %v1927 = vmax.f32 %v1863, -128.0
        %v1928 = vmax.f32 %v1864, -128.0
        %v1929 = vmax.f32 %v1865, -128.0
        %v1930 = vmax.f32 %v1866, -128.0
        %v1931 = vmax.f32 %v1867, -128.0
        %v1932 = vmax.f32 %v1868, -128.0
        %v1933 = vmax.f32 %v1869, -128.0
        %v1934 = vmax.f32 %v1870, -128.0
        %v1935 = vmax.f32 %v1871, -128.0
        %v1936 = vmax.f32 %v1872, -128.0
        %v1937 = vmax.f32 %v1873, -128.0
        %v1938 = vmax.f32 %v1874, -128.0
        %v1939 = vmax.f32 %v1875, -128.0
        %v1940 = vmax.f32 %v1876, -128.0
        %v1941 = vmax.f32 %v1877, -128.0
        %v1942 = vmax.f32 %v1878, -128.0
        %v1943 = vmax.f32 %v1879, -128.0
        %v1944 = vmin.f32 %v1880, 127.0
        %v1945 = vmin.f32 %v1881, 127.0
        %v1946 = vmin.f32 %v1882, 127.0
        %v1947 = vmin.f32 %v1883, 127.0
        %v1948 = vmin.f32 %v1884, 127.0
        %v1949 = vmin.f32 %v1885, 127.0
        %v1950 = vmin.f32 %v1886, 127.0
        %v1951 = vmin.f32 %v1887, 127.0
        %v1952 = vmin.f32 %v1888, 127.0
        %v1953 = vmin.f32 %v1889, 127.0
        %v1954 = vmin.f32 %v1890, 127.0
        %v1955 = vmin.f32 %v1891, 127.0
        %v1956 = vmin.f32 %v1892, 127.0
        %v1957 = vmin.f32 %v1893, 127.0
        %v1958 = vmin.f32 %v1894, 127.0
        %v1959 = vmin.f32 %v1895, 127.0
        %v1960 = vmin.f32 %v1896, 127.0
        %v1961 = vmin.f32 %v1897, 127.0
        %v1962 = vmin.f32 %v1898, 127.0
        %v1963 = vmin.f32 %v1899, 127.0
        %v1964 = vmin.f32 %v1900, 127.0
        %v1965 = vmin.f32 %v1901, 127.0
        %v1966 = vmin.f32 %v1902, 127.0
        %v1967 = vmin.f32 %v1903, 127.0
        %v1968 = vmin.f32 %v1904, 127.0
        %v1969 = vmin.f32 %v1905, 127.0
        %v1970 = vmin.f32 %v1906, 127.0
        %v1971 = vmin.f32 %v1907, 127.0
        %v1972 = vmin.f32 %v1908, 127.0
        %v1973 = vmin.f32 %v1909, 127.0
        %v1974 = vmin.f32 %v1910, 127.0
        %v1975 = vmin.f32 %v1911, 127.0
        %v1976 = vmin.f32 %v1912, 127.0
        %v1977 = vmin.f32 %v1913, 127.0
        %v1978 = vmin.f32 %v1914, 127.0
        %v1979 = vmin.f32 %v1915, 127.0
        %v1980 = vmin.f32 %v1916, 127.0
        %v1981 = vmin.f32 %v1917, 127.0
        %v1982 = vmin.f32 %v1918, 127.0
        %v1983 = vmin.f32 %v1919, 127.0
        %v1984 = vmin.f32 %v1920, 127.0
        %v1985 = vmin.f32 %v1921, 127.0
        %v1986 = vmin.f32 %v1922, 127.0
        %v1987 = vmin.f32 %v1923, 127.0
        %v1988 = vmin.f32 %v1924, 127.0
        %v1989 = vmin.f32 %v1925, 127.0
        %v1990 = vmin.f32 %v1926, 127.0
        %v1991 = vmin.f32 %v1927, 127.0
        %v1992 = vmin.f32 %v1928, 127.0
        %v1993 = vmin.f32 %v1929, 127.0
        %v1994 = vmin.f32 %v1930, 127.0
        %v1995 = vmin.f32 %v1931, 127.0
        %v1996 = vmin.f32 %v1932, 127.0
        %v1997 = vmin.f32 %v1933, 127.0
        %v1998 = vmin.f32 %v1934, 127.0
        %v1999 = vmin.f32 %v1935, 127.0
        %v2000 = vmin.f32 %v1936, 127.0
        %v2001 = vmin.f32 %v1937, 127.0
        %v2002 = vmin.f32 %v1938, 127.0
        %v2003 = vmin.f32 %v1939, 127.0
        %v2004 = vmin.f32 %v1940, 127.0
        %v2005 = vmin.f32 %v1941, 127.0
        %v2006 = vmin.f32 %v1942, 127.0
        %v2007 = vmin.f32 %v1943, 127.0
        %v2008 = vpack.c.bf16 %v1948, %v1944
        %v2009 = vpack.c.bf16 %v1949, %v1945
        %v2010 = vpack.c.bf16 %v1950, %v1946
        %v2011 = vpack.c.bf16 %v1951, %v1947
        %v2012 = vpack.c.bf16 %v1956, %v1952
        %v2013 = vpack.c.bf16 %v1957, %v1953
        %v2014 = vpack.c.bf16 %v1958, %v1954
        %v2015 = vpack.c.bf16 %v1959, %v1955
        %v2016 = vpack.c.bf16 %v1964, %v1960
        %v2017 = vpack.c.bf16 %v1965, %v1961
        %v2018 = vpack.c.bf16 %v1966, %v1962
        %v2019 = vpack.c.bf16 %v1967, %v1963
        %v2020 = vpack.c.bf16 %v1972, %v1968
        %v2021 = vpack.c.bf16 %v1973, %v1969
        %v2022 = vpack.c.bf16 %v1974, %v1970
        %v2023 = vpack.c.bf16 %v1975, %v1971
        %v2024 = vpack.c.bf16 %v1980, %v1976
        %v2025 = vpack.c.bf16 %v1981, %v1977
        %v2026 = vpack.c.bf16 %v1982, %v1978
        %v2027 = vpack.c.bf16 %v1983, %v1979
        %v2028 = vpack.c.bf16 %v1988, %v1984
        %v2029 = vpack.c.bf16 %v1989, %v1985
        %v2030 = vpack.c.bf16 %v1990, %v1986
        %v2031 = vpack.c.bf16 %v1991, %v1987
        %v2032 = vpack.c.bf16 %v1996, %v1992
        %v2033 = vpack.c.bf16 %v1997, %v1993
        %v2034 = vpack.c.bf16 %v1998, %v1994
        %v2035 = vpack.c.bf16 %v1999, %v1995
        %v2036 = vpack.c.bf16 %v2004, %v2000
        %v2037 = vpack.c.bf16 %v2005, %v2001
        %v2038 = vpack.c.bf16 %v2006, %v2002
        %v2039 = vpack.c.bf16 %v2007, %v2003
        %v2104 = vunpack.c.l.b16 %v1153
        %v2105 = vunpack.c.l.b16 %v1154
        %v2106 = vunpack.c.l.b16 %v1155
        %v2107 = vunpack.c.l.b16 %v1156
        %v2108 = vunpack.c.l.b16 %v1157
        %v2109 = vunpack.c.l.b16 %v1158
        %v2110 = vunpack.c.l.b16 %v1159
        %v2111 = vunpack.c.l.b16 %v1160
        %v2112 = vunpack.c.l.b16 %v1161
        %v2113 = vunpack.c.l.b16 %v1162
        %v2114 = vunpack.c.l.b16 %v1163
        %v2115 = vunpack.c.l.b16 %v1164
        %v2116 = vunpack.c.l.b16 %v1165
        %v2117 = vunpack.c.l.b16 %v1166
        %v2118 = vunpack.c.l.b16 %v1167
        %v2119 = vunpack.c.l.b16 %v1168
        %v2120 = vunpack.c.l.b16 %v1169
        %v2121 = vunpack.c.l.b16 %v1170
        %v2122 = vunpack.c.l.b16 %v1171
        %v2123 = vunpack.c.l.b16 %v1172
        %v2124 = vunpack.c.l.b16 %v1173
        %v2125 = vunpack.c.l.b16 %v1174
        %v2126 = vunpack.c.l.b16 %v1175
        %v2127 = vunpack.c.l.b16 %v1176
        %v2128 = vunpack.c.l.b16 %v1177
        %v2129 = vunpack.c.l.b16 %v1178
        %v2130 = vunpack.c.l.b16 %v1179
        %v2131 = vunpack.c.l.b16 %v1180
        %v2132 = vunpack.c.l.b16 %v1181
        %v2133 = vunpack.c.l.b16 %v1182
        %v2134 = vunpack.c.l.b16 %v1183
        %v2135 = vunpack.c.l.b16 %v1184
        %v2136 = vunpack.c.l.b16 %v1185
        %v2137 = vunpack.c.l.b16 %v1186
        %v2138 = vunpack.c.l.b16 %v1187
        %v2139 = vunpack.c.l.b16 %v1188
        %v2140 = vunpack.c.l.b16 %v1189
        %v2141 = vunpack.c.l.b16 %v1190
        %v2142 = vunpack.c.l.b16 %v1191
        %v2143 = vunpack.c.l.b16 %v1192
        %v2144 = vunpack.c.l.b16 %v1193
        %v2145 = vunpack.c.l.b16 %v1194
        %v2146 = vunpack.c.l.b16 %v1195
        %v2147 = vunpack.c.l.b16 %v1196
        %v2148 = vunpack.c.l.b16 %v1197
        %v2149 = vunpack.c.l.b16 %v1198
        %v2150 = vunpack.c.l.b16 %v1199
        %v2151 = vunpack.c.l.b16 %v1200
        %v2152 = vunpack.c.l.b16 %v1201
        %v2153 = vunpack.c.l.b16 %v1202
        %v2154 = vunpack.c.l.b16 %v1203
        %v2155 = vunpack.c.l.b16 %v1204
        %v2156 = vunpack.c.l.b16 %v1205
        %v2157 = vunpack.c.l.b16 %v1206
        %v2158 = vunpack.c.l.b16 %v1207
        %v2159 = vunpack.c.l.b16 %v1208
        %v2160 = vunpack.c.l.b16 %v1209
        %v2161 = vunpack.c.l.b16 %v1210
        %v2162 = vunpack.c.l.b16 %v1211
        %v2163 = vunpack.c.l.b16 %v1212
        %v2164 = vunpack.c.l.b16 %v1213
        %v2165 = vunpack.c.l.b16 %v1214
        %v2166 = vunpack.c.l.b16 %v1215
        %v2167 = vunpack.c.l.b16 %v1216
        %v2168 = vpack.c.b16 %v2105, %v2104
        %v2169 = vpack.c.b16 %v2107, %v2106
        %v2170 = vpack.c.b16 %v2109, %v2108
        %v2171 = vpack.c.b16 %v2111, %v2110
        %v2172 = vpack.c.b16 %v2113, %v2112
        %v2173 = vpack.c.b16 %v2115, %v2114
        %v2174 = vpack.c.b16 %v2117, %v2116
        %v2175 = vpack.c.b16 %v2119, %v2118
        %v2176 = vpack.c.b16 %v2121, %v2120
        %v2177 = vpack.c.b16 %v2123, %v2122
        %v2178 = vpack.c.b16 %v2125, %v2124
        %v2179 = vpack.c.b16 %v2127, %v2126
        %v2180 = vpack.c.b16 %v2129, %v2128
        %v2181 = vpack.c.b16 %v2131, %v2130
        %v2182 = vpack.c.b16 %v2133, %v2132
        %v2183 = vpack.c.b16 %v2135, %v2134
        %v2184 = vpack.c.b16 %v2137, %v2136
        %v2185 = vpack.c.b16 %v2139, %v2138
        %v2186 = vpack.c.b16 %v2141, %v2140
        %v2187 = vpack.c.b16 %v2143, %v2142
        %v2188 = vpack.c.b16 %v2145, %v2144
        %v2189 = vpack.c.b16 %v2147, %v2146
        %v2190 = vpack.c.b16 %v2149, %v2148
        %v2191 = vpack.c.b16 %v2151, %v2150
        %v2192 = vpack.c.b16 %v2153, %v2152
        %v2193 = vpack.c.b16 %v2155, %v2154
        %v2194 = vpack.c.b16 %v2157, %v2156
        %v2195 = vpack.c.b16 %v2159, %v2158
        %v2196 = vpack.c.b16 %v2161, %v2160
        %v2197 = vpack.c.b16 %v2163, %v2162
        %v2198 = vpack.c.b16 %v2165, %v2164
        %v2199 = vpack.c.b16 %v2167, %v2166
        %2232 = vmatprep.subr.bf16.mxu0 0
        %2233 = vmatpush1.bf16.msra.mxu0 %v2175
        %2234 = vmatprep.subr.bf16.mxu0 0
        %2235 = vmatpush1.bf16.msra.mxu0 %v2174
        %2236 = vmatprep.subr.bf16.mxu0 0
        %2237 = vmatpush1.bf16.msra.mxu0 %v2173
        %2238 = vmatprep.subr.bf16.mxu0 0
        %2239 = vmatpush1.bf16.msra.mxu0 %v2172
        %2240 = vmatprep.subr.bf16.mxu0 0
        %2241 = vmatpush1.bf16.msra.mxu0 %v2171
        %2242 = vmatprep.subr.bf16.mxu0 0
        %2243 = vmatpush1.bf16.msra.mxu0 %v2170
        %2244 = vmatprep.subr.bf16.mxu0 0
        %2245 = vmatpush1.bf16.msra.mxu0 %v2169
        %2246 = vmatprep.subr.bf16.mxu0 0
        %2247 = vmatpush1.bf16.msra.mxu0 %v2168
        %2248 = vmatprep.subr.bf16.mxu0 0
        %2249 = vmatpush2.bf16.msra.mxu0 %v2183
        %2250 = vmatprep.subr.bf16.mxu0 0
        %2251 = vmatpush2.bf16.msra.mxu0 %v2182
        %2252 = vmatprep.subr.bf16.mxu0 0
        %2253 = vmatpush2.bf16.msra.mxu0 %v2181
        %2254 = vmatprep.subr.bf16.mxu0 0
        %2255 = vmatpush2.bf16.msra.mxu0 %v2180
        %2256 = vmatprep.subr.bf16.mxu0 0
        %2257 = vmatpush2.bf16.msra.mxu0 %v2179
        %2258 = vmatprep.subr.bf16.mxu0 0
        %2259 = vmatpush2.bf16.msra.mxu0 %v2178
        %2260 = vmatprep.subr.bf16.mxu0 0
        %2261 = vmatpush2.bf16.msra.mxu0 %v2177
        %2262 = vmatprep.subr.bf16.mxu0 0
        %2263 = vmatpush2.bf16.msra.mxu0 %v2176
        %2264 = vmatprep.mubr.bf16.mxu0 %v2009
        %2265 = vmatmul.mubr.bf16.gmra.mxu0 %v2008
        %v2266 = vpop.f32.mrf.mxu0
        %v2267 = vadd.f32 0.0, %v2266
        %v2268 = vpop.f32.mrf.mxu0
        %v2269 = vpop.f32.mrf.mxu0
        %v2270 = vadd.f32 0.0, %v2269
        %v2271 = vpop.f32.mrf.mxu0
        %2272 = vmatprep.mubr.bf16.mxu0 %v2013
        %2273 = vmatmul.mubr.bf16.gmra.mxu0 %v2012
        %v2274 = vpop.f32.mrf.mxu0
        %v2275 = vadd.f32 0.0, %v2274
        %v2276 = vpop.f32.mrf.mxu0
        %v2277 = vpop.f32.mrf.mxu0
        %v2278 = vadd.f32 0.0, %v2277
        %v2279 = vpop.f32.mrf.mxu0
        %2280 = vmatprep.mubr.bf16.mxu0 %v2017
        %2281 = vmatmul.mubr.bf16.gmra.mxu0 %v2016
        %v2282 = vpop.f32.mrf.mxu0
        %v2283 = vadd.f32 0.0, %v2282
        %v2284 = vpop.f32.mrf.mxu0
        %v2285 = vpop.f32.mrf.mxu0
        %v2286 = vadd.f32 0.0, %v2285
        %v2287 = vpop.f32.mrf.mxu0
        %2288 = vmatprep.mubr.bf16.mxu0 %v2021
        %2289 = vmatmul.mubr.bf16.gmra.mxu0 %v2020
        %v2290 = vpop.f32.mrf.mxu0
        %v2291 = vadd.f32 0.0, %v2290
        %v2292 = vpop.f32.mrf.mxu0
        %v2293 = vpop.f32.mrf.mxu0
        %v2294 = vadd.f32 0.0, %v2293
        %v2295 = vpop.f32.mrf.mxu0
        %2296 = vmatprep.mubr.bf16.mxu0 %v2025
        %2297 = vmatmul.mubr.bf16.gmra.mxu0 %v2024
        %v2298 = vpop.f32.mrf.mxu0
        %v2299 = vadd.f32 0.0, %v2298
        %v2300 = vpop.f32.mrf.mxu0
        %v2301 = vpop.f32.mrf.mxu0
        %v2302 = vadd.f32 0.0, %v2301
        %v2303 = vpop.f32.mrf.mxu0
        %2304 = vmatprep.mubr.bf16.mxu0 %v2029
        %2305 = vmatmul.mubr.bf16.gmra.mxu0 %v2028
        %v2306 = vpop.f32.mrf.mxu0
        %v2307 = vadd.f32 0.0, %v2306
        %v2308 = vpop.f32.mrf.mxu0
        %v2309 = vpop.f32.mrf.mxu0
        %v2310 = vadd.f32 0.0, %v2309
        %v2311 = vpop.f32.mrf.mxu0
        %2312 = vmatprep.mubr.bf16.mxu0 %v2033
        %2313 = vmatmul.mubr.bf16.gmra.mxu0 %v2032
        %v2314 = vpop.f32.mrf.mxu0
        %v2315 = vadd.f32 0.0, %v2314
        %v2316 = vpop.f32.mrf.mxu0
        %v2317 = vpop.f32.mrf.mxu0
        %v2318 = vadd.f32 0.0, %v2317
        %v2319 = vpop.f32.mrf.mxu0
        %2320 = vmatprep.mubr.bf16.mxu0 %v2037
        %2321 = vmatmul.mubr.bf16.gmra.mxu0 %v2036
        %v2322 = vpop.f32.mrf.mxu0
        %v2323 = vadd.f32 0.0, %v2322
        %v2324 = vpop.f32.mrf.mxu0
        %v2325 = vpop.f32.mrf.mxu0
        %v2326 = vadd.f32 0.0, %v2325
        %v2327 = vpop.f32.mrf.mxu0
        %2328 = vdwg.mxu0
        %2329 = vmatprep.subr.bf16.mxu0 0
        %2330 = vmatpush1.bf16.msra.mxu0 %v2191
        %2331 = vmatprep.subr.bf16.mxu0 0
        %2332 = vmatpush1.bf16.msra.mxu0 %v2190
        %2333 = vmatprep.subr.bf16.mxu0 0
        %2334 = vmatpush1.bf16.msra.mxu0 %v2189
        %2335 = vmatprep.subr.bf16.mxu0 0
        %2336 = vmatpush1.bf16.msra.mxu0 %v2188
        %2337 = vmatprep.subr.bf16.mxu0 0
        %2338 = vmatpush1.bf16.msra.mxu0 %v2187
        %2339 = vmatprep.subr.bf16.mxu0 0
        %2340 = vmatpush1.bf16.msra.mxu0 %v2186
        %2341 = vmatprep.subr.bf16.mxu0 0
        %2342 = vmatpush1.bf16.msra.mxu0 %v2185
        %2343 = vmatprep.subr.bf16.mxu0 0
        %2344 = vmatpush1.bf16.msra.mxu0 %v2184
        %2345 = vmatprep.subr.bf16.mxu0 0
        %2346 = vmatpush2.bf16.msra.mxu0 %v2199
        %2347 = vmatprep.subr.bf16.mxu0 0
        %2348 = vmatpush2.bf16.msra.mxu0 %v2198
        %2349 = vmatprep.subr.bf16.mxu0 0
        %2350 = vmatpush2.bf16.msra.mxu0 %v2197
        %2351 = vmatprep.subr.bf16.mxu0 0
        %2352 = vmatpush2.bf16.msra.mxu0 %v2196
        %2353 = vmatprep.subr.bf16.mxu0 0
        %2354 = vmatpush2.bf16.msra.mxu0 %v2195
        %2355 = vmatprep.subr.bf16.mxu0 0
        %2356 = vmatpush2.bf16.msra.mxu0 %v2194
        %2357 = vmatprep.subr.bf16.mxu0 0
        %2358 = vmatpush2.bf16.msra.mxu0 %v2193
        %2359 = vmatprep.subr.bf16.mxu0 0
        %2360 = vmatpush2.bf16.msra.mxu0 %v2192
        %2361 = vmatprep.mubr.bf16.mxu0 %v2011
        %2362 = vmatmul.mubr.bf16.gmra.mxu0 %v2010
        %v2363 = vpop.f32.mrf.mxu0
        %v2364 = vadd.f32 %v2267, %v2363
        %v2365 = vpop.f32.mrf.mxu0
        %v2366 = vpop.f32.mrf.mxu0
        %v2367 = vadd.f32 %v2270, %v2366
        %v2368 = vpop.f32.mrf.mxu0
        %2369 = vmatprep.mubr.bf16.mxu0 %v2015
        %2370 = vmatmul.mubr.bf16.gmra.mxu0 %v2014
        %v2371 = vpop.f32.mrf.mxu0
        %v2372 = vadd.f32 %v2275, %v2371
        %v2373 = vpop.f32.mrf.mxu0
        %v2374 = vpop.f32.mrf.mxu0
        %v2375 = vadd.f32 %v2278, %v2374
        %v2376 = vpop.f32.mrf.mxu0
        %2377 = vmatprep.mubr.bf16.mxu0 %v2019
        %2378 = vmatmul.mubr.bf16.gmra.mxu0 %v2018
        %v2379 = vpop.f32.mrf.mxu0
        %v2380 = vadd.f32 %v2283, %v2379
        %v2381 = vpop.f32.mrf.mxu0
        %v2382 = vpop.f32.mrf.mxu0
        %v2383 = vadd.f32 %v2286, %v2382
        %v2384 = vpop.f32.mrf.mxu0
        %2385 = vmatprep.mubr.bf16.mxu0 %v2023
        %2386 = vmatmul.mubr.bf16.gmra.mxu0 %v2022
        %v2387 = vpop.f32.mrf.mxu0
        %v2388 = vadd.f32 %v2291, %v2387
        %v2389 = vpop.f32.mrf.mxu0
        %v2390 = vpop.f32.mrf.mxu0
        %v2391 = vadd.f32 %v2294, %v2390
        %v2392 = vpop.f32.mrf.mxu0
        %2393 = vmatprep.mubr.bf16.mxu0 %v2027
        %2394 = vmatmul.mubr.bf16.gmra.mxu0 %v2026
        %v2395 = vpop.f32.mrf.mxu0
        %v2396 = vadd.f32 %v2299, %v2395
        %v2397 = vpop.f32.mrf.mxu0
        %v2398 = vpop.f32.mrf.mxu0
        %v2399 = vadd.f32 %v2302, %v2398
        %v2400 = vpop.f32.mrf.mxu0
        %2401 = vmatprep.mubr.bf16.mxu0 %v2031
        %2402 = vmatmul.mubr.bf16.gmra.mxu0 %v2030
        %v2403 = vpop.f32.mrf.mxu0
        %v2404 = vadd.f32 %v2307, %v2403
        %v2405 = vpop.f32.mrf.mxu0
        %v2406 = vpop.f32.mrf.mxu0
        %v2407 = vadd.f32 %v2310, %v2406
        %v2408 = vpop.f32.mrf.mxu0
        %2409 = vmatprep.mubr.bf16.mxu0 %v2035
        %2410 = vmatmul.mubr.bf16.gmra.mxu0 %v2034
        %v2411 = vpop.f32.mrf.mxu0
        %v2412 = vadd.f32 %v2315, %v2411
        %v2413 = vpop.f32.mrf.mxu0
        %v2414 = vpop.f32.mrf.mxu0
        %v2415 = vadd.f32 %v2318, %v2414
        %v2416 = vpop.f32.mrf.mxu0
        %2417 = vmatprep.mubr.bf16.mxu0 %v2039
        %2418 = vmatmul.mubr.bf16.gmra.mxu0 %v2038
        %v2419 = vpop.f32.mrf.mxu0
        %v2420 = vadd.f32 %v2323, %v2419
        %v2421 = vpop.f32.mrf.mxu0
        %v2422 = vpop.f32.mrf.mxu0
        %v2423 = vadd.f32 %v2326, %v2422
        %v2424 = vpop.f32.mrf.mxu0
        %2425 = vdwg.mxu0
        %v2426 = vstv %s1217
        %v2427 = vmul.f32 %v1704, %v2426
        %v2428 = vmul.f32 %v1705, %v2426
        %v2429 = vmul.f32 %v1706, %v2426
        %v2430 = vmul.f32 %v1707, %v2426
        %v2431 = vmul.f32 %v1708, %v2426
        %v2432 = vmul.f32 %v1709, %v2426
        %v2433 = vmul.f32 %v1710, %v2426
        %v2434 = vmul.f32 %v1711, %v2426
        %v2435 = vmul.f32 %v1712, %v2426
        %v2436 = vmul.f32 %v1713, %v2426
        %v2437 = vmul.f32 %v1714, %v2426
        %v2438 = vmul.f32 %v1715, %v2426
        %v2439 = vmul.f32 %v1716, %v2426
        %v2440 = vmul.f32 %v1717, %v2426
        %v2441 = vmul.f32 %v1718, %v2426
        %v2442 = vmul.f32 %v1719, %v2426
        %v2443 = vmul.f32 %v2364, %v2427
        %v2444 = vmul.f32 %v2367, %v2428
        %v2445 = vmul.f32 %v2372, %v2429
        %v2446 = vmul.f32 %v2375, %v2430
        %v2447 = vmul.f32 %v2380, %v2431
        %v2448 = vmul.f32 %v2383, %v2432
        %v2449 = vmul.f32 %v2388, %v2433
        %v2450 = vmul.f32 %v2391, %v2434
        %v2451 = vmul.f32 %v2396, %v2435
        %v2452 = vmul.f32 %v2399, %v2436
        %v2453 = vmul.f32 %v2404, %v2437
        %v2454 = vmul.f32 %v2407, %v2438
        %v2455 = vmul.f32 %v2412, %v2439
        %v2456 = vmul.f32 %v2415, %v2440
        %v2457 = vmul.f32 %v2420, %v2441
        %v2458 = vmul.f32 %v2423, %v2442
        %2459 = vst [vmem:[%s259] sm:$0xff] %v2443
        %2460 = vst [vmem:[%s259 + $0x8] sm:$0xff] %v2444
        %2461 = vst [vmem:[%s259 + $0x10] sm:$0xff] %v2445
        %2462 = vst [vmem:[%s259 + $0x18] sm:$0xff] %v2446
        %2463 = vst [vmem:[%s259 + $0x20] sm:$0xff] %v2447
        %2464 = vst [vmem:[%s259 + $0x28] sm:$0xff] %v2448
        %2465 = vst [vmem:[%s259 + $0x30] sm:$0xff] %v2449
        %2466 = vst [vmem:[%s259 + $0x38] sm:$0xff] %v2450
        %2467 = vst [vmem:[%s259 + $0x40] sm:$0xff] %v2451
        %2468 = vst [vmem:[%s259 + $0x48] sm:$0xff] %v2452
        %2469 = vst [vmem:[%s259 + $0x50] sm:$0xff] %v2453
        %2470 = vst [vmem:[%s259 + $0x58] sm:$0xff] %v2454
        %2471 = vst [vmem:[%s259 + $0x60] sm:$0xff] %v2455
        %2472 = vst [vmem:[%s259 + $0x68] sm:$0xff] %v2456
        %2473 = vst [vmem:[%s259 + $0x70] sm:$0xff] %v2457
        %2474 = vst [vmem:[%s259 + $0x78] sm:$0xff] %v2458
        %s2475 = sand.u32 %s160, 1
        %s2476 = scalar_lea.sflag [#allocation3], %s2475
        %s2477 = sand.u32 %s160, 1
        %s2478 = smul.addr %s2477, 128
        %s2479 = scalar_lea.vmem [#allocation5], %s2478
        // Predicated region
        $region49: #{feedforward.1} parent=43 // pred_check
          %p2480 = pneg %p170
        $region50: #{feedforward.1} parent=43 // pred_check_branch
          %2482 = sbr.rel (%p2480) target = $region52
        $region51: #{feedforward.1} parent=43 // pred_region
          %s2483 = smul.u32 16, %s21
          %s2485 = ssub.s32 2048, 2048
          %2486 = vsyncadd %s2476, %s2485
          %s2487 = smul.addr %s2483, 128
          %s2488 = scalar_lea.hbm %s6, %s2487
          %s2489 = sshll.u32 %s2479, 4
          %s2490 = int_to_ptr.vmem [resolvable:$true] %s2489
          %2495 = dma.vmem_to_hbm [thread:$0]  %s2490, 2048, %s2488, %s2476, 128, 128, 8
        $region52: #{feedforward.1} parent=43 // pred_fallthru
          _
      $region44: #{feedforward.1} parent=5 // pred_fallthru
        _
      %p2496 = scmp.le.s32.totalorder 2, %s16
      // Predicated region
      $region53: #{feedforward.1} parent=5 // pred_check
        %p2497 = pneg %p2496
      $region54: #{feedforward.1} parent=5 // pred_check_branch
        %2499 = sbr.rel (%p2497) target = $region56
      $region55: #{feedforward.1} parent=5 // pred_region
        %s2500 = ssub.s32 %s16, 2
        // Predicated region
        $region57: #{feedforward.1} parent=55 // pred_check
          %p2501 = pneg %p176
        $region58: #{feedforward.1} parent=55 // pred_check_branch
          %2503 = sbr.rel (%p2501) target = $region60
        $region59: #{feedforward.1} parent=55 // pred_region
          %s2504 = sand.u32 %s161, 1
          %s2505 = scalar_lea.sflag [#allocation3], %s2504
          %s2506 = sand.u32 %s161, 1
          %s2507 = smul.addr %s2506, 128
          %s2508 = scalar_lea.vmem [#allocation5], %s2507
          %2509 = dma.done %s2505, 2048
        $region60: #{feedforward.1} parent=55 // pred_fallthru
          _
      $region56: #{feedforward.1} parent=5 // pred_fallthru
        _
    $region6: #{feedforward.1} parent=1 // loop_footer
      %s20 = sadd.s32 1, %s16
    $region7: #{feedforward.1} parent=1 // loop_footer_branch
      %15 = sbr.rel target = $region3
    $region8: #{feedforward.1} parent=1 // loop_exit
      _
    %2510 = vsyncpa [#allocation3], 1
    %s2511 = scalar_lea.sflag [#allocation3], 1
    %2512 = vsyncpa %s2511, 1
    %2513 = vsyncpa [#allocation4], 1
    %s2514 = scalar_lea.sflag [#allocation4], 1
    %2515 = vsyncpa %s2514, 1

</llo_original>
